<compile_context>
chip_gen: v5e
topology: v5e:2x2
jax: 0.10.0
libtpu: 0.0.40
codegen_flags: <defaults>
</compile_context>

<pallas_src>
import functools
import math

import jax
import jax.numpy as jnp
from jax.experimental import pallas as pl
from jax.experimental.pallas import tpu as pltpu

LN_EPS = 1e-5        # PyTorch nn.LayerNorm default
LANE = 128           # TPU lane width
SUBLANE = 8
HALO = 8             # extra group rows read past each tile; covers (K-1)//stride <= 8


def _round_up(n, m):
    return ((n + m - 1) // m) * m


def _cdiv(a, b):
    return (a + b - 1) // b


# ---------------------------------------------------------------------------
# Generation-aware sizing
# ---------------------------------------------------------------------------
@functools.lru_cache(maxsize=None)
def _vmem_capacity_bytes():
    try:
        return int(pltpu.get_tpu_info().vmem_capacity_bytes)
    except Exception:
        return 64 * 1024 * 1024          # v7x-conservative fallback


def _vmem_limit_bytes():
    # ~3/4 of physical VMEM: ~48 MiB on v7x (64 MiB), ~96 MiB on v5e/v6e.
    return int(min(_vmem_capacity_bytes() * 3 // 4, 112 * 1024 * 1024))


def _row_tile_target():
    # Large tiles amortize the ~0.35us per-grid-step overhead; go larger on
    # 128-MiB-VMEM chips.
    return 3072 if _vmem_capacity_bytes() >= (100 << 20) else 2048


def _compiler_params():
    return pltpu.CompilerParams(dimension_semantics=("parallel", "parallel"),
                                vmem_limit_bytes=_vmem_limit_bytes())


# ---------------------------------------------------------------------------
# In-kernel math helpers (all f32)
# ---------------------------------------------------------------------------
def _gelu(x):
    # tanh-approx GELU: the transcendental runs on the EUP (its own VLIW slot)
    # instead of a ~14-op erf polynomial on the VPU.
    c = 0.7978845608028654               # sqrt(2/pi)
    return 0.5 * x * (1.0 + jnp.tanh(c * (x + 0.044715 * (x * x * x))))


def _layernorm(x, gamma, beta, c_true):
    # Two-pass LayerNorm over the last (lane) axis; only the first `c_true`
    # lanes are real.  Padded lanes of x are exact zeros but would become
    # (-mean) after centering, so they are masked out of the variance.
    c_pad = x.shape[-1]
    inv_c = 1.0 / float(c_true)
    mean = jnp.sum(x, axis=-1, keepdims=True) * inv_c
    xc = x - mean
    if c_true != c_pad:
        lane = jax.lax.broadcasted_iota(jnp.int32, x.shape, x.ndim - 1)
        xc = jnp.where(lane < c_true, xc, 0.0)
    var = jnp.sum(xc * xc, axis=-1, keepdims=True) * inv_c
    return xc * jax.lax.rsqrt(var + LN_EPS) * gamma + beta


# ---------------------------------------------------------------------------
# Pallas kernels
# ---------------------------------------------------------------------------
def _conv_body(xm_ref, xh_ref, w_ref, xw_ref, tm, n_phase):
    # Strided Conv1d over the grouped input window:
    #   xw = [tile window ; halo]   ((tm + HALO) group rows, stride*C_in lanes)
    #   y[t] = sum_a  xw[t + a, :] @ w[a]     (f32 accumulation on the MXU)
    xw_ref[0:tm, :] = xm_ref[0]
    xw_ref[tm:tm + HALO, :] = xh_ref[0]
    xfull = xw_ref[...]
    cout = w_ref.shape[2]
    acc = jnp.zeros((tm, cout), jnp.float32)
    for a in range(n_phase):
        z = jnp.dot(xfull, w_ref[a], preferred_element_type=jnp.float32)
        acc = acc + z[a:a + tm]
    return acc


def _block_kernel(xm_ref, xh_ref, w_ref, b_ref, g_ref, be_ref, o_ref, xw_ref,
                  *, n_phase, c_true):
    # Conv1d (in-kernel window) + bias -> LayerNorm(C) -> GELU.
    tm = o_ref.shape[1]
    x = _conv_body(xm_ref, xh_ref, w_ref, xw_ref, tm, n_phase) + b_ref[...]
    x = _layernorm(x, g_ref[...], be_ref[...], c_true)
    o_ref[0] = _gelu(x).astype(o_ref.dtype)


def _block_head_kernel(xm_ref, xh_ref, w_ref, b_ref, g_ref, be_ref,
                       hg_ref, hbe_ref, hw_ref, hb_ref, o_ref, xw_ref,
                       *, n_phase, c_true):
    # Last conv block fused with the head: conv + bias -> LN -> GELU ->
    # LN -> Linear (+ bias).
    tm = o_ref.shape[1]
    x = _conv_body(xm_ref, xh_ref, w_ref, xw_ref, tm, n_phase) + b_ref[...]
    x = _layernorm(x, g_ref[...], be_ref[...], c_true)
    x = _gelu(x)
    x = _layernorm(x, hg_ref[...], hbe_ref[...], c_true)
    y = jnp.dot(x.astype(hw_ref.dtype), hw_ref[...],
                preferred_element_type=jnp.float32)
    # TODO(synk): nn.Dropout(p=0.1) is identity in eval mode; training-mode
    # dropout (mask + 1/(1-p) scaling) is not applied here.
    o_ref[0] = (y + hb_ref[...]).astype(o_ref.dtype)


# ---------------------------------------------------------------------------
# pallas_call wrapper for one HuBERTEmbeddingBlock (optionally + head)
# ---------------------------------------------------------------------------
def _conv_block_call(xg, block, tm, out_rows, head=None):
    """xg: (B, G, stride*C_in) grouped bf16 input with G >= out_rows + HALO.

    Returns (B, out_rows, C_out_pad) bf16, or (B, out_rows, out_pad) bf16 when
    the LN+Linear head is fused in.
    """
    batch, n_groups, sc = xg.shape
    w = block["w"]                             # (n_phase, stride*C_in, C_out_pad)
    n_phase, _, c_pad = w.shape
    n_tiles = out_rows // tm
    assert out_rows % tm == 0 and n_tiles * tm + HALO <= n_groups

    def _inv2(b, i):                           # grid-invariant 2-D operands
        return (0, 0)

    in_specs = [
        pl.BlockSpec((1, tm, sc), lambda b, i: (b, i, 0)),
        pl.BlockSpec((1, HALO, sc),
                     lambda b, i, _t=tm // SUBLANE: (b, (i + 1) * _t, 0)),
        pl.BlockSpec(w.shape, lambda b, i: (0, 0, 0)),
        pl.BlockSpec(block["b"].shape, _inv2),
        pl.BlockSpec(block["gamma"].shape, _inv2),
        pl.BlockSpec(block["beta"].shape, _inv2),
    ]
    args = [xg, xg, w, block["b"], block["gamma"], block["beta"]]

    if head is None:
        kern = functools.partial(_block_kernel, n_phase=n_phase,
                                 c_true=block["c_true"])
        out_cols = c_pad
    else:
        in_specs += [pl.BlockSpec(head["gamma"].shape, _inv2),
                     pl.BlockSpec(head["beta"].shape, _inv2),
                     pl.BlockSpec(head["w"].shape, _inv2),
                     pl.BlockSpec(head["b"].shape, _inv2)]
        args += [head["gamma"], head["beta"], head["w"], head["b"]]
        kern = functools.partial(_block_head_kernel, n_phase=n_phase,
                                 c_true=block["c_true"])
        out_cols = head["w"].shape[1]

    rows = batch * out_rows
    flops = 2 * rows * n_phase * sc * c_pad
    bytes_accessed = rows * sc * 2 + rows * out_cols * 2 + w.size * 2
    if head is not None:
        flops += 2 * rows * c_pad * out_cols
        bytes_accessed += head["w"].size * 2
    cost = pl.CostEstimate(flops=int(flops),
                           transcendentals=int(2 * rows * c_pad),
                           bytes_accessed=int(bytes_accessed))

    return pl.pallas_call(
        kern,
        out_shape=jax.ShapeDtypeStruct((batch, out_rows, out_cols),
                                       jnp.bfloat16),
        grid=(batch, n_tiles),
        in_specs=in_specs,
        out_specs=pl.BlockSpec((1, tm, out_cols), lambda b, i: (b, i, 0)),
        scratch_shapes=[pltpu.VMEM((tm + HALO, sc), jnp.bfloat16)],
        compiler_params=_compiler_params(),
        cost_estimate=cost,
    )(*args)


# ---------------------------------------------------------------------------
# Shape planning: exact tile multiples everywhere (no partial blocks, no
# wrapper pad/slice round-trips of activations).
# ---------------------------------------------------------------------------
def _pick_tile(rows_needed, target, mult):
    # Tile must be a multiple of `mult`, capped at `target`, and small enough
    # to leave >= 2 row tiles so the parallel grid can span both v7x cores.
    target = max(target // mult, 1) * mult
    half = max(_round_up(_cdiv(rows_needed, 2), mult), mult)
    return min(target, half)


def _plan(t_in, kernel_sizes, strides, target):
    n = len(kernel_sizes)
    lens = [t_in]
    for ks, st in zip(kernel_sizes, strides):
        t_next = (lens[-1] - ks) // st + 1
        assert t_next >= 1, "input too short for the conv stack"
        assert (ks - 1) // st <= HALO, "kernel_size too large vs stride"
        lens.append(t_next)

    tiles = [0] * n
    allocs = [0] * n
    need = lens[n]
    for i in range(n - 1, -1, -1):
        s_next = strides[i + 1] if i + 1 < n else 1
        mult = SUBLANE * s_next // math.gcd(SUBLANE, s_next)
        tiles[i] = _pick_tile(need, target, mult)
        allocs[i] = _cdiv(need, tiles[i]) * tiles[i]
        if i > 0:
            need = max((allocs[i] + HALO) * strides[i], lens[i])
    in_alloc = (allocs[0] + HALO) * strides[0]
    return lens, tiles, allocs, in_alloc


# ---------------------------------------------------------------------------
# Parameter init and forward
# ---------------------------------------------------------------------------
def init_params(key, in_channels, out_channels, num_features, kernel_size,
                stride):
    params = {"blocks": [], "out_channels": out_channels,
              "in_channels": in_channels}
    c_prev_true = in_channels
    c_prev_eff = in_channels             # block-0 input channels stay unpadded
    for nf, ks, st in zip(num_features, kernel_size, stride):
        c_out_pad = _round_up(nf, LANE)
        n_phase = (ks - 1) // st + 1
        key, kw, kb = jax.random.split(key, 3)
        scale = 1.0 / math.sqrt(c_prev_true * ks)
        w_true = scale * jax.random.normal(kw, (ks, c_prev_true, nf),
                                           jnp.float32)
        b_true = scale * jax.random.normal(kb, (nf,), jnp.float32)
        # Weight layout for the grouped-window kernel:
        #   w[a, r*C_in_eff + c, :] = W_pytorch[:, c, a*stride + r]
        # with zeros for taps >= ks and for padded channel positions.
        w4 = jnp.zeros((n_phase, st, c_prev_eff, c_out_pad), jnp.float32)
        for k in range(ks):
            w4 = w4.at[k // st, k % st, :c_prev_true, :nf].set(w_true[k])
        params["blocks"].append({
            "kernel_size": ks,
            "stride": st,
            "n_phase": n_phase,
            "c_true": nf,
            "w": w4.reshape(n_phase, st * c_prev_eff,
                            c_out_pad).astype(jnp.bfloat16),
            "b": jnp.zeros((1, c_out_pad), jnp.float32).at[0, :nf].set(b_true),
            "gamma": jnp.zeros((1, c_out_pad), jnp.float32).at[0, :nf].set(1.0),
            "beta": jnp.zeros((1, c_out_pad), jnp.float32),
        })
        c_prev_true = nf
        c_prev_eff = c_out_pad

    c_last = num_features[-1]
    c_last_pad = _round_up(c_last, LANE)
    out_pad = _round_up(out_channels, LANE)
    key, kw, kb = jax.random.split(key, 3)
    scale = 1.0 / math.sqrt(c_last)
    lw = scale * jax.random.normal(kw, (c_last, out_channels), jnp.float32)
    lb = scale * jax.random.normal(kb, (out_channels,), jnp.float32)
    params["head"] = {
        "gamma": jnp.zeros((1, c_last_pad), jnp.float32).at[0, :c_last].set(1.0),
        "beta": jnp.zeros((1, c_last_pad), jnp.float32),
        "w": jnp.zeros((c_last_pad, out_pad), jnp.float32)
               .at[:c_last, :out_channels].set(lw).astype(jnp.bfloat16),
        "b": jnp.zeros((1, out_pad), jnp.float32)
               .at[0, :out_channels].set(lb),
    }
    return params


def hubert_embedding_forward(params, x_ncl):
    """x_ncl: (B, C_in, T) -- the layout PyTorch's Conv1d expects."""
    blocks = params["blocks"]
    batch, c_in, t_in = x_ncl.shape
    kernel_sizes = [b_["kernel_size"] for b_ in blocks]
    strides = [b_["stride"] for b_ in blocks]
    lens, tiles, allocs, in_alloc = _plan(t_in, kernel_sizes, strides,
                                          _row_tile_target())

    # (B, C_in, T) -> (B, T, C_in), sized to exactly the rows block 0 reads,
    # then the free grouped reshape (B, T/s0, s0*C_in) for the first kernel.
    x = jnp.transpose(x_ncl, (0, 2, 1))
    if t_in < in_alloc:
        x = jnp.pad(x, ((0, 0), (0, in_alloc - t_in), (0, 0)))
    elif t_in > in_alloc:
        x = x[:, :in_alloc, :]
    x = x.astype(jnp.bfloat16).reshape(batch, in_alloc // strides[0],
                                       strides[0] * c_in)

    for i, blk in enumerate(blocks):
        last = i == len(blocks) - 1
        y = _conv_block_call(x, blk, tiles[i], allocs[i],
                             head=params["head"] if last else None)
        if last:
            # Keep only the valid rows / channels; cast the small final slab
            # to f32 (kernel writes bf16 to halve the largest HBM writeback).
            return y[:, :lens[i + 1], :params["out_channels"]].astype(
                jnp.float32)
        s_next = blocks[i + 1]["stride"]
        # Free row-major reshape into the next layer's grouped view.
        x = y.reshape(batch, allocs[i] // s_next, s_next * y.shape[2])


# ---------------------------------------------------------------------------
if __name__ == "__main__":
    # Small, HuBERT-like config: raw waveform (1 channel) -> 2 conv blocks.
    in_channels = 1
    out_channels = 24
    num_features = [16, 32]
    kernel_size = [10, 4]
    stride = [5, 2]

    batch = 2
    length = 250   # T1 = (250-10)//5+1 = 49, T2 = (49-4)//2+1 = 23

    key = jax.random.PRNGKey(0)
    key, kp, kx = jax.random.split(key, 3)
    params = init_params(kp, in_channels, out_channels, num_features,
                         kernel_size, stride)
    x = jax.random.normal(kx, (batch, in_channels, length), jnp.float32)

    fwd = jax.jit(functools.partial(hubert_embedding_forward, params))
    out = jax.block_until_ready(fwd(x))
    assert out.shape == (batch, 23, out_channels), out.shape
    assert bool(jnp.all(jnp.isfinite(out)))
    print("KERNEL_OK")
</pallas_src>

<mosaic_0001>
module attributes {stable_mosaic.version = 11 : i64} {
  func.func @_block_kernel(%arg0: i32, %arg1: i32, %arg2: memref<1x40x5xbf16, #tpu.memory_space<vmem>>, %arg3: memref<1x8x5xbf16, #tpu.memory_space<vmem>>, %arg4: memref<2x5x128xbf16, #tpu.memory_space<vmem>>, %arg5: memref<1x128xf32, #tpu.memory_space<vmem>>, %arg6: memref<1x128xf32, #tpu.memory_space<vmem>>, %arg7: memref<1x128xf32, #tpu.memory_space<vmem>>, %arg8: memref<1x40x128xbf16, #tpu.memory_space<vmem>>, %arg9: memref<48x5xbf16, #tpu.memory_space<vmem>>) attributes {dimension_semantics = [#tpu.dimension_semantics<parallel>, #tpu.dimension_semantics<parallel>], iteration_bounds = array<i64: 2, 2>, scalar_prefetch = 0 : i64, scratch_operands = 1 : i64, tpu.core_type = #tpu.core_type<tc>, window_params = [{transform_indices = @transform_0, window_bounds = array<i64: 1, 40, 5>}, {transform_indices = @transform_1, window_bounds = array<i64: 1, 8, 5>}, {pipeline_mode = #tpu.pipeline_mode<synchronous>, transform_indices = @transform_2, window_bounds = array<i64: 2, 5, 128>}, {pipeline_mode = #tpu.pipeline_mode<synchronous>, transform_indices = @transform_3, window_bounds = array<i64: 1, 128>}, {pipeline_mode = #tpu.pipeline_mode<synchronous>, transform_indices = @transform_4, window_bounds = array<i64: 1, 128>}, {pipeline_mode = #tpu.pipeline_mode<synchronous>, transform_indices = @transform_5, window_bounds = array<i64: 1, 128>}, {transform_indices = @transform_6, window_bounds = array<i64: 1, 40, 128>}]} {
    %c0 = arith.constant 0 : index
    %c0_0 = arith.constant 0 : index
    %c0_1 = arith.constant 0 : index
    %0 = vector.load %arg2[%c0, %c0_0, %c0_1] : memref<1x40x5xbf16, #tpu.memory_space<vmem>>, vector<1x40x5xbf16>
    %1 = vector.shape_cast %0 : vector<1x40x5xbf16> to vector<40x5xbf16>
    %c0_2 = arith.constant 0 : index
    %c0_3 = arith.constant 0 : index
    %2 = vector.load %arg9[%c0_2, %c0_3] : memref<48x5xbf16, #tpu.memory_space<vmem>>, vector<40x5xbf16>
    tpu.vector_store %arg9[%c0_2, %c0_3], %1 {strides = array<i32>} : memref<48x5xbf16, #tpu.memory_space<vmem>>, vector<40x5xbf16>,
    %c0_4 = arith.constant 0 : index
    %c0_5 = arith.constant 0 : index
    %c0_6 = arith.constant 0 : index
    %3 = vector.load %arg3[%c0_4, %c0_5, %c0_6] : memref<1x8x5xbf16, #tpu.memory_space<vmem>>, vector<1x8x5xbf16>
    %4 = vector.shape_cast %3 : vector<1x8x5xbf16> to vector<8x5xbf16>
    %c40 = arith.constant 40 : index
    %c0_7 = arith.constant 0 : index
    %5 = vector.load %arg9[%c40, %c0_7] : memref<48x5xbf16, #tpu.memory_space<vmem>>, vector<8x5xbf16>
    tpu.vector_store %arg9[%c40, %c0_7], %4 {strides = array<i32>} : memref<48x5xbf16, #tpu.memory_space<vmem>>, vector<8x5xbf16>,
    %c0_8 = arith.constant 0 : index
    %c0_9 = arith.constant 0 : index
    %6 = vector.load %arg9[%c0_8, %c0_9] : memref<48x5xbf16, #tpu.memory_space<vmem>>, vector<48x5xbf16>
    %cst = arith.constant 0.000000e+00 : f32
    %7 = vector.broadcast %cst : f32 to vector<40x128xf32>
    %c0_10 = arith.constant 0 : index
    %c0_11 = arith.constant 0 : index
    %c0_12 = arith.constant 0 : index
    %8 = vector.load %arg4[%c0_10, %c0_11, %c0_12] : memref<2x5x128xbf16, #tpu.memory_space<vmem>>, vector<1x5x128xbf16>
    %9 = vector.shape_cast %8 : vector<1x5x128xbf16> to vector<5x128xbf16>
    %cst_13 = arith.constant dense<0.000000e+00> : vector<48x128xf32>
    %10 = tpu.matmul %6, %9, %cst_13 {dimension_numbers = #tpu.dot_dimension_numbers<[1], [0], [0], [1], [0, 0, 1, 1], [], []>} : vector<48x5xbf16>, vector<5x128xbf16>, vector<48x128xf32> -> vector<48x128xf32>
    %11 = vector.extract_strided_slice %10 {offsets = [0, 0], sizes = [40, 128], strides = [1, 1]} : vector<48x128xf32> to vector<40x128xf32>
    %12 = arith.addf %7, %11 : vector<40x128xf32>
    %c1 = arith.constant 1 : index
    %c0_14 = arith.constant 0 : index
    %c0_15 = arith.constant 0 : index
    %13 = vector.load %arg4[%c1, %c0_14, %c0_15] : memref<2x5x128xbf16, #tpu.memory_space<vmem>>, vector<1x5x128xbf16>
    %14 = vector.shape_cast %13 : vector<1x5x128xbf16> to vector<5x128xbf16>
    %cst_16 = arith.constant dense<0.000000e+00> : vector<48x128xf32>
    %15 = tpu.matmul %6, %14, %cst_16 {dimension_numbers = #tpu.dot_dimension_numbers<[1], [0], [0], [1], [0, 0, 1, 1], [], []>} : vector<48x5xbf16>, vector<5x128xbf16>, vector<48x128xf32> -> vector<48x128xf32>
    %16 = vector.extract_strided_slice %15 {offsets = [1, 0], sizes = [40, 128], strides = [1, 1]} : vector<48x128xf32> to vector<40x128xf32>
    %17 = arith.addf %12, %16 : vector<40x128xf32>
    %c0_17 = arith.constant 0 : index
    %c0_18 = arith.constant 0 : index
    %18 = vector.load %arg5[%c0_17, %c0_18] : memref<1x128xf32, #tpu.memory_space<vmem>>, vector<1x128xf32>
    %19 = vector.broadcast %18 : vector<1x128xf32> to vector<40x128xf32>
    %20 = arith.addf %17, %19 : vector<40x128xf32>
    %c0_19 = arith.constant 0 : index
    %c0_20 = arith.constant 0 : index
    %21 = vector.load %arg6[%c0_19, %c0_20] : memref<1x128xf32, #tpu.memory_space<vmem>>, vector<1x128xf32>
    %c0_21 = arith.constant 0 : index
    %c0_22 = arith.constant 0 : index
    %22 = vector.load %arg7[%c0_21, %c0_22] : memref<1x128xf32, #tpu.memory_space<vmem>>, vector<1x128xf32>
    %cst_23 = arith.constant dense<0.000000e+00> : vector<40xf32>
    %23 = vector.multi_reduction <add>, %20, %cst_23 [1] : vector<40x128xf32> to vector<40xf32>
    %24 = vector.shape_cast %23 : vector<40xf32> to vector<40x1xf32>
    %cst_24 = arith.constant 6.250000e-02 : f32
    %25 = vector.broadcast %cst_24 : f32 to vector<40x1xf32>
    %26 = arith.mulf %24, %25 : vector<40x1xf32>
    %27 = vector.broadcast %26 : vector<40x1xf32> to vector<40x128xf32>
    %28 = arith.subf %20, %27 : vector<40x128xf32>
    %29 = tpu.iota {dimensions = array<i32: 1>} : vector<40x128xi32>
    %c16_i32 = arith.constant 16 : i32
    %30 = vector.broadcast %c16_i32 : i32 to vector<40x128xi32>
    %31 = arith.cmpi slt, %29, %30 : vector<40x128xi32>
    %cst_25 = arith.constant 0.000000e+00 : f32
    %32 = vector.broadcast %cst_25 : f32 to vector<40x128xf32>
    %33 = arith.select %31, %28, %32 : vector<40x128xi1>, vector<40x128xf32>
    %34 = arith.mulf %33, %33 : vector<40x128xf32>
    %cst_26 = arith.constant dense<0.000000e+00> : vector<40xf32>
    %35 = vector.multi_reduction <add>, %34, %cst_26 [1] : vector<40x128xf32> to vector<40xf32>
    %36 = vector.shape_cast %35 : vector<40xf32> to vector<40x1xf32>
    %cst_27 = arith.constant 6.250000e-02 : f32
    %37 = vector.broadcast %cst_27 : f32 to vector<40x1xf32>
    %38 = arith.mulf %36, %37 : vector<40x1xf32>
    %cst_28 = arith.constant 9.99999974E-6 : f32
    %39 = vector.broadcast %cst_28 : f32 to vector<40x1xf32>
    %40 = arith.addf %38, %39 : vector<40x1xf32>
    %41 = math.rsqrt %40 : vector<40x1xf32>
    %42 = vector.broadcast %41 : vector<40x1xf32> to vector<40x128xf32>
    %43 = arith.mulf %33, %42 : vector<40x128xf32>
    %44 = vector.broadcast %21 : vector<1x128xf32> to vector<40x128xf32>
    %45 = arith.mulf %43, %44 : vector<40x128xf32>
    %46 = vector.broadcast %22 : vector<1x128xf32> to vector<40x128xf32>
    %47 = arith.addf %45, %46 : vector<40x128xf32>
    %cst_29 = arith.constant 5.000000e-01 : f32
    %48 = vector.broadcast %cst_29 : f32 to vector<40x128xf32>
    %49 = arith.mulf %48, %47 : vector<40x128xf32>
    %50 = arith.mulf %47, %47 : vector<40x128xf32>
    %51 = arith.mulf %50, %47 : vector<40x128xf32>
    %cst_30 = arith.constant 4.471500e-02 : f32
    %52 = vector.broadcast %cst_30 : f32 to vector<40x128xf32>
    %53 = arith.mulf %52, %51 : vector<40x128xf32>
    %54 = arith.addf %47, %53 : vector<40x128xf32>
    %cst_31 = arith.constant 0.797884583 : f32
    %55 = vector.broadcast %cst_31 : f32 to vector<40x128xf32>
    %56 = arith.mulf %55, %54 : vector<40x128xf32>
    %57 = math.tanh %56 : vector<40x128xf32>
    %cst_32 = arith.constant 1.000000e+00 : f32
    %58 = vector.broadcast %cst_32 : f32 to vector<40x128xf32>
    %59 = arith.addf %58, %57 : vector<40x128xf32>
    %60 = arith.mulf %49, %59 : vector<40x128xf32>
    %61 = arith.truncf %60 : vector<40x128xf32> to vector<40x128xbf16>
    %c0_33 = arith.constant 0 : index
    %c0_34 = arith.constant 0 : index
    %c0_35 = arith.constant 0 : index
    %62 = vector.load %arg8[%c0_33, %c0_34, %c0_35] : memref<1x40x128xbf16, #tpu.memory_space<vmem>>, vector<1x40x128xbf16>
    %63 = vector.shape_cast %62 : vector<1x40x128xbf16> to vector<40x128xbf16>
    %64 = vector.shape_cast %61 : vector<40x128xbf16> to vector<1x40x128xbf16>
    tpu.vector_store %arg8[%c0_33, %c0_34, %c0_35], %64 {strides = array<i32>} : memref<1x40x128xbf16, #tpu.memory_space<vmem>>, vector<1x40x128xbf16>,
    return
  }
  func.func @transform_0(%arg0: i32, %arg1: i32) -> (i32, i32, i32) {
    %c0_i32 = arith.constant 0 : i32
    %c0_i32_0 = arith.constant 0 : i32
    return %arg0, %arg1, %c0_i32 : i32, i32, i32
  }
  func.func @transform_1(%arg0: i32, %arg1: i32) -> (i32, i32, i32) {
    %c1_i32 = arith.constant 1 : i32
    %0 = arith.addi %arg1, %c1_i32 : i32
    %c5_i32 = arith.constant 5 : i32
    %1 = arith.muli %0, %c5_i32 : i32
    %c0_i32 = arith.constant 0 : i32
    %c0_i32_0 = arith.constant 0 : i32
    return %arg0, %1, %c0_i32 : i32, i32, i32
  }
  func.func @transform_2(%arg0: i32, %arg1: i32) -> (i32, i32, i32) {
    %c0_i32 = arith.constant 0 : i32
    %c0_i32_0 = arith.constant 0 : i32
    %c0_i32_1 = arith.constant 0 : i32
    %c0_i32_2 = arith.constant 0 : i32
    return %c0_i32, %c0_i32_0, %c0_i32_1 : i32, i32, i32
  }
  func.func @transform_3(%arg0: i32, %arg1: i32) -> (i32, i32) {
    %c0_i32 = arith.constant 0 : i32
    %c0_i32_0 = arith.constant 0 : i32
    %c0_i32_1 = arith.constant 0 : i32
    return %c0_i32, %c0_i32_0 : i32, i32
  }
  func.func @transform_4(%arg0: i32, %arg1: i32) -> (i32, i32) {
    %c0_i32 = arith.constant 0 : i32
    %c0_i32_0 = arith.constant 0 : i32
    %c0_i32_1 = arith.constant 0 : i32
    return %c0_i32, %c0_i32_0 : i32, i32
  }
  func.func @transform_5(%arg0: i32, %arg1: i32) -> (i32, i32) {
    %c0_i32 = arith.constant 0 : i32
    %c0_i32_0 = arith.constant 0 : i32
    %c0_i32_1 = arith.constant 0 : i32
    return %c0_i32, %c0_i32_0 : i32, i32
  }
  func.func @transform_6(%arg0: i32, %arg1: i32) -> (i32, i32, i32) {
    %c0_i32 = arith.constant 0 : i32
    %c0_i32_0 = arith.constant 0 : i32
    return %arg0, %arg1, %c0_i32 : i32, i32, i32
  }
}

module attributes {stable_mosaic.version = 11 : i64} {
  func.func @_block_head_kernel(%arg0: i32, %arg1: i32, %arg2: memref<1x16x256xbf16, #tpu.memory_space<vmem>>, %arg3: memref<1x8x256xbf16, #tpu.memory_space<vmem>>, %arg4: memref<2x256x128xbf16, #tpu.memory_space<vmem>>, %arg5: memref<1x128xf32, #tpu.memory_space<vmem>>, %arg6: memref<1x128xf32, #tpu.memory_space<vmem>>, %arg7: memref<1x128xf32, #tpu.memory_space<vmem>>, %arg8: memref<1x128xf32, #tpu.memory_space<vmem>>, %arg9: memref<1x128xf32, #tpu.memory_space<vmem>>, %arg10: memref<128x128xbf16, #tpu.memory_space<vmem>>, %arg11: memref<1x128xf32, #tpu.memory_space<vmem>>, %arg12: memref<1x16x128xbf16, #tpu.memory_space<vmem>>, %arg13: memref<24x256xbf16, #tpu.memory_space<vmem>>) attributes {dimension_semantics = [#tpu.dimension_semantics<parallel>, #tpu.dimension_semantics<parallel>], iteration_bounds = array<i64: 2, 2>, scalar_prefetch = 0 : i64, scratch_operands = 1 : i64, tpu.core_type = #tpu.core_type<tc>, window_params = [{transform_indices = @transform_0, window_bounds = array<i64: 1, 16, 256>}, {transform_indices = @transform_1, window_bounds = array<i64: 1, 8, 256>}, {pipeline_mode = #tpu.pipeline_mode<synchronous>, transform_indices = @transform_2, window_bounds = array<i64: 2, 256, 128>}, {pipeline_mode = #tpu.pipeline_mode<synchronous>, transform_indices = @transform_3, window_bounds = array<i64: 1, 128>}, {pipeline_mode = #tpu.pipeline_mode<synchronous>, transform_indices = @transform_4, window_bounds = array<i64: 1, 128>}, {pipeline_mode = #tpu.pipeline_mode<synchronous>, transform_indices = @transform_5, window_bounds = array<i64: 1, 128>}, {pipeline_mode = #tpu.pipeline_mode<synchronous>, transform_indices = @transform_6, window_bounds = array<i64: 1, 128>}, {pipeline_mode = #tpu.pipeline_mode<synchronous>, transform_indices = @transform_7, window_bounds = array<i64: 1, 128>}, {pipeline_mode = #tpu.pipeline_mode<synchronous>, transform_indices = @transform_8, window_bounds = array<i64: 128, 128>}, {pipeline_mode = #tpu.pipeline_mode<synchronous>, transform_indices = @transform_9, window_bounds = array<i64: 1, 128>}, {transform_indices = @transform_10, window_bounds = array<i64: 1, 16, 128>}]} {
    %c0 = arith.constant 0 : index
    %c0_0 = arith.constant 0 : index
    %c0_1 = arith.constant 0 : index
    %0 = vector.load %arg2[%c0, %c0_0, %c0_1] : memref<1x16x256xbf16, #tpu.memory_space<vmem>>, vector<1x16x256xbf16>
    %1 = vector.shape_cast %0 : vector<1x16x256xbf16> to vector<16x256xbf16>
    %c0_2 = arith.constant 0 : index
    %c0_3 = arith.constant 0 : index
    %2 = vector.load %arg13[%c0_2, %c0_3] : memref<24x256xbf16, #tpu.memory_space<vmem>>, vector<16x256xbf16>
    tpu.vector_store %arg13[%c0_2, %c0_3], %1 {strides = array<i32>} : memref<24x256xbf16, #tpu.memory_space<vmem>>, vector<16x256xbf16>,
    %c0_4 = arith.constant 0 : index
    %c0_5 = arith.constant 0 : index
    %c0_6 = arith.constant 0 : index
    %3 = vector.load %arg3[%c0_4, %c0_5, %c0_6] : memref<1x8x256xbf16, #tpu.memory_space<vmem>>, vector<1x8x256xbf16>
    %4 = vector.shape_cast %3 : vector<1x8x256xbf16> to vector<8x256xbf16>
    %c16 = arith.constant 16 : index
    %c0_7 = arith.constant 0 : index
    %5 = vector.load %arg13[%c16, %c0_7] : memref<24x256xbf16, #tpu.memory_space<vmem>>, vector<8x256xbf16>
    tpu.vector_store %arg13[%c16, %c0_7], %4 {strides = array<i32>} : memref<24x256xbf16, #tpu.memory_space<vmem>>, vector<8x256xbf16>,
    %c0_8 = arith.constant 0 : index
    %c0_9 = arith.constant 0 : index
    %6 = vector.load %arg13[%c0_8, %c0_9] : memref<24x256xbf16, #tpu.memory_space<vmem>>, vector<24x256xbf16>
    %cst = arith.constant 0.000000e+00 : f32
    %7 = vector.broadcast %cst : f32 to vector<16x128xf32>
    %c0_10 = arith.constant 0 : index
    %c0_11 = arith.constant 0 : index
    %c0_12 = arith.constant 0 : index
    %8 = vector.load %arg4[%c0_10, %c0_11, %c0_12] : memref<2x256x128xbf16, #tpu.memory_space<vmem>>, vector<1x256x128xbf16>
    %9 = vector.shape_cast %8 : vector<1x256x128xbf16> to vector<256x128xbf16>
    %cst_13 = arith.constant dense<0.000000e+00> : vector<24x128xf32>
    %10 = tpu.matmul %6, %9, %cst_13 {dimension_numbers = #tpu.dot_dimension_numbers<[1], [0], [0], [1], [0, 0, 1, 1], [], []>} : vector<24x256xbf16>, vector<256x128xbf16>, vector<24x128xf32> -> vector<24x128xf32>
    %11 = vector.extract_strided_slice %10 {offsets = [0, 0], sizes = [16, 128], strides = [1, 1]} : vector<24x128xf32> to vector<16x128xf32>
    %12 = arith.addf %7, %11 : vector<16x128xf32>
    %c1 = arith.constant 1 : index
    %c0_14 = arith.constant 0 : index
    %c0_15 = arith.constant 0 : index
    %13 = vector.load %arg4[%c1, %c0_14, %c0_15] : memref<2x256x128xbf16, #tpu.memory_space<vmem>>, vector<1x256x128xbf16>
    %14 = vector.shape_cast %13 : vector<1x256x128xbf16> to vector<256x128xbf16>
    %cst_16 = arith.constant dense<0.000000e+00> : vector<24x128xf32>
    %15 = tpu.matmul %6, %14, %cst_16 {dimension_numbers = #tpu.dot_dimension_numbers<[1], [0], [0], [1], [0, 0, 1, 1], [], []>} : vector<24x256xbf16>, vector<256x128xbf16>, vector<24x128xf32> -> vector<24x128xf32>
    %16 = vector.extract_strided_slice %15 {offsets = [1, 0], sizes = [16, 128], strides = [1, 1]} : vector<24x128xf32> to vector<16x128xf32>
    %17 = arith.addf %12, %16 : vector<16x128xf32>
    %c0_17 = arith.constant 0 : index
    %c0_18 = arith.constant 0 : index
    %18 = vector.load %arg5[%c0_17, %c0_18] : memref<1x128xf32, #tpu.memory_space<vmem>>, vector<1x128xf32>
    %19 = vector.broadcast %18 : vector<1x128xf32> to vector<16x128xf32>
    %20 = arith.addf %17, %19 : vector<16x128xf32>
    %c0_19 = arith.constant 0 : index
    %c0_20 = arith.constant 0 : index
    %21 = vector.load %arg6[%c0_19, %c0_20] : memref<1x128xf32, #tpu.memory_space<vmem>>, vector<1x128xf32>
    %c0_21 = arith.constant 0 : index
    %c0_22 = arith.constant 0 : index
    %22 = vector.load %arg7[%c0_21, %c0_22] : memref<1x128xf32, #tpu.memory_space<vmem>>, vector<1x128xf32>
    %cst_23 = arith.constant dense<0.000000e+00> : vector<16xf32>
    %23 = vector.multi_reduction <add>, %20, %cst_23 [1] : vector<16x128xf32> to vector<16xf32>
    %24 = vector.shape_cast %23 : vector<16xf32> to vector<16x1xf32>
    %cst_24 = arith.constant 3.125000e-02 : f32
    %25 = vector.broadcast %cst_24 : f32 to vector<16x1xf32>
    %26 = arith.mulf %24, %25 : vector<16x1xf32>
    %27 = vector.broadcast %26 : vector<16x1xf32> to vector<16x128xf32>
    %28 = arith.subf %20, %27 : vector<16x128xf32>
    %29 = tpu.iota {dimensions = array<i32: 1>} : vector<16x128xi32>
    %c32_i32 = arith.constant 32 : i32
    %30 = vector.broadcast %c32_i32 : i32 to vector<16x128xi32>
    %31 = arith.cmpi slt, %29, %30 : vector<16x128xi32>
    %cst_25 = arith.constant 0.000000e+00 : f32
    %32 = vector.broadcast %cst_25 : f32 to vector<16x128xf32>
    %33 = arith.select %31, %28, %32 : vector<16x128xi1>, vector<16x128xf32>
    %34 = arith.mulf %33, %33 : vector<16x128xf32>
    %cst_26 = arith.constant dense<0.000000e+00> : vector<16xf32>
    %35 = vector.multi_reduction <add>, %34, %cst_26 [1] : vector<16x128xf32> to vector<16xf32>
    %36 = vector.shape_cast %35 : vector<16xf32> to vector<16x1xf32>
    %cst_27 = arith.constant 3.125000e-02 : f32
    %37 = vector.broadcast %cst_27 : f32 to vector<16x1xf32>
    %38 = arith.mulf %36, %37 : vector<16x1xf32>
    %cst_28 = arith.constant 9.99999974E-6 : f32
    %39 = vector.broadcast %cst_28 : f32 to vector<16x1xf32>
    %40 = arith.addf %38, %39 : vector<16x1xf32>
    %41 = math.rsqrt %40 : vector<16x1xf32>
    %42 = vector.broadcast %41 : vector<16x1xf32> to vector<16x128xf32>
    %43 = arith.mulf %33, %42 : vector<16x128xf32>
    %44 = vector.broadcast %21 : vector<1x128xf32> to vector<16x128xf32>
    %45 = arith.mulf %43, %44 : vector<16x128xf32>
    %46 = vector.broadcast %22 : vector<1x128xf32> to vector<16x128xf32>
    %47 = arith.addf %45, %46 : vector<16x128xf32>
    %cst_29 = arith.constant 5.000000e-01 : f32
    %48 = vector.broadcast %cst_29 : f32 to vector<16x128xf32>
    %49 = arith.mulf %48, %47 : vector<16x128xf32>
    %50 = arith.mulf %47, %47 : vector<16x128xf32>
    %51 = arith.mulf %50, %47 : vector<16x128xf32>
    %cst_30 = arith.constant 4.471500e-02 : f32
    %52 = vector.broadcast %cst_30 : f32 to vector<16x128xf32>
    %53 = arith.mulf %52, %51 : vector<16x128xf32>
    %54 = arith.addf %47, %53 : vector<16x128xf32>
    %cst_31 = arith.constant 0.797884583 : f32
    %55 = vector.broadcast %cst_31 : f32 to vector<16x128xf32>
    %56 = arith.mulf %55, %54 : vector<16x128xf32>
    %57 = math.tanh %56 : vector<16x128xf32>
    %cst_32 = arith.constant 1.000000e+00 : f32
    %58 = vector.broadcast %cst_32 : f32 to vector<16x128xf32>
    %59 = arith.addf %58, %57 : vector<16x128xf32>
    %60 = arith.mulf %49, %59 : vector<16x128xf32>
    %c0_33 = arith.constant 0 : index
    %c0_34 = arith.constant 0 : index
    %61 = vector.load %arg8[%c0_33, %c0_34] : memref<1x128xf32, #tpu.memory_space<vmem>>, vector<1x128xf32>
    %c0_35 = arith.constant 0 : index
    %c0_36 = arith.constant 0 : index
    %62 = vector.load %arg9[%c0_35, %c0_36] : memref<1x128xf32, #tpu.memory_space<vmem>>, vector<1x128xf32>
    %cst_37 = arith.constant dense<0.000000e+00> : vector<16xf32>
    %63 = vector.multi_reduction <add>, %60, %cst_37 [1] : vector<16x128xf32> to vector<16xf32>
    %64 = vector.shape_cast %63 : vector<16xf32> to vector<16x1xf32>
    %cst_38 = arith.constant 3.125000e-02 : f32
    %65 = vector.broadcast %cst_38 : f32 to vector<16x1xf32>
    %66 = arith.mulf %64, %65 : vector<16x1xf32>
    %67 = vector.broadcast %66 : vector<16x1xf32> to vector<16x128xf32>
    %68 = arith.subf %60, %67 : vector<16x128xf32>
    %69 = tpu.iota {dimensions = array<i32: 1>} : vector<16x128xi32>
    %c32_i32_39 = arith.constant 32 : i32
    %70 = vector.broadcast %c32_i32_39 : i32 to vector<16x128xi32>
    %71 = arith.cmpi slt, %69, %70 : vector<16x128xi32>
    %cst_40 = arith.constant 0.000000e+00 : f32
    %72 = vector.broadcast %cst_40 : f32 to vector<16x128xf32>
    %73 = arith.select %71, %68, %72 : vector<16x128xi1>, vector<16x128xf32>
    %74 = arith.mulf %73, %73 : vector<16x128xf32>
    %cst_41 = arith.constant dense<0.000000e+00> : vector<16xf32>
    %75 = vector.multi_reduction <add>, %74, %cst_41 [1] : vector<16x128xf32> to vector<16xf32>
    %76 = vector.shape_cast %75 : vector<16xf32> to vector<16x1xf32>
    %cst_42 = arith.constant 3.125000e-02 : f32
    %77 = vector.broadcast %cst_42 : f32 to vector<16x1xf32>
    %78 = arith.mulf %76, %77 : vector<16x1xf32>
    %cst_43 = arith.constant 9.99999974E-6 : f32
    %79 = vector.broadcast %cst_43 : f32 to vector<16x1xf32>
    %80 = arith.addf %78, %79 : vector<16x1xf32>
    %81 = math.rsqrt %80 : vector<16x1xf32>
    %82 = vector.broadcast %81 : vector<16x1xf32> to vector<16x128xf32>
    %83 = arith.mulf %73, %82 : vector<16x128xf32>
    %84 = vector.broadcast %61 : vector<1x128xf32> to vector<16x128xf32>
    %85 = arith.mulf %83, %84 : vector<16x128xf32>
    %86 = vector.broadcast %62 : vector<1x128xf32> to vector<16x128xf32>
    %87 = arith.addf %85, %86 : vector<16x128xf32>
    %88 = arith.truncf %87 : vector<16x128xf32> to vector<16x128xbf16>
    %c0_44 = arith.constant 0 : index
    %c0_45 = arith.constant 0 : index
    %89 = vector.load %arg10[%c0_44, %c0_45] : memref<128x128xbf16, #tpu.memory_space<vmem>>, vector<128x128xbf16>
    %cst_46 = arith.constant dense<0.000000e+00> : vector<16x128xf32>
    %90 = tpu.matmul %88, %89, %cst_46 {dimension_numbers = #tpu.dot_dimension_numbers<[1], [0], [0], [1], [0, 0, 1, 1], [], []>} : vector<16x128xbf16>, vector<128x128xbf16>, vector<16x128xf32> -> vector<16x128xf32>
    %c0_47 = arith.constant 0 : index
    %c0_48 = arith.constant 0 : index
    %91 = vector.load %arg11[%c0_47, %c0_48] : memref<1x128xf32, #tpu.memory_space<vmem>>, vector<1x128xf32>
    %92 = vector.broadcast %91 : vector<1x128xf32> to vector<16x128xf32>
    %93 = arith.addf %90, %92 : vector<16x128xf32>
    %94 = arith.truncf %93 : vector<16x128xf32> to vector<16x128xbf16>
    %c0_49 = arith.constant 0 : index
    %c0_50 = arith.constant 0 : index
    %c0_51 = arith.constant 0 : index
    %95 = vector.load %arg12[%c0_49, %c0_50, %c0_51] : memref<1x16x128xbf16, #tpu.memory_space<vmem>>, vector<1x16x128xbf16>
    %96 = vector.shape_cast %95 : vector<1x16x128xbf16> to vector<16x128xbf16>
    %97 = vector.shape_cast %94 : vector<16x128xbf16> to vector<1x16x128xbf16>
    tpu.vector_store %arg12[%c0_49, %c0_50, %c0_51], %97 {strides = array<i32>} : memref<1x16x128xbf16, #tpu.memory_space<vmem>>, vector<1x16x128xbf16>,
    return
  }
  func.func @transform_0(%arg0: i32, %arg1: i32) -> (i32, i32, i32) {
    %c0_i32 = arith.constant 0 : i32
    %c0_i32_0 = arith.constant 0 : i32
    return %arg0, %arg1, %c0_i32 : i32, i32, i32
  }
  func.func @transform_1(%arg0: i32, %arg1: i32) -> (i32, i32, i32) {
    %c1_i32 = arith.constant 1 : i32
    %0 = arith.addi %arg1, %c1_i32 : i32
    %c2_i32 = arith.constant 2 : i32
    %1 = arith.muli %0, %c2_i32 : i32
    %c0_i32 = arith.constant 0 : i32
    %c0_i32_0 = arith.constant 0 : i32
    return %arg0, %1, %c0_i32 : i32, i32, i32
  }
  func.func @transform_2(%arg0: i32, %arg1: i32) -> (i32, i32, i32) {
    %c0_i32 = arith.constant 0 : i32
    %c0_i32_0 = arith.constant 0 : i32
    %c0_i32_1 = arith.constant 0 : i32
    %c0_i32_2 = arith.constant 0 : i32
    return %c0_i32, %c0_i32_0, %c0_i32_1 : i32, i32, i32
  }
  func.func @transform_3(%arg0: i32, %arg1: i32) -> (i32, i32) {
    %c0_i32 = arith.constant 0 : i32
    %c0_i32_0 = arith.constant 0 : i32
    %c0_i32_1 = arith.constant 0 : i32
    return %c0_i32, %c0_i32_0 : i32, i32
  }
  func.func @transform_4(%arg0: i32, %arg1: i32) -> (i32, i32) {
    %c0_i32 = arith.constant 0 : i32
    %c0_i32_0 = arith.constant 0 : i32
    %c0_i32_1 = arith.constant 0 : i32
    return %c0_i32, %c0_i32_0 : i32, i32
  }
  func.func @transform_5(%arg0: i32, %arg1: i32) -> (i32, i32) {
    %c0_i32 = arith.constant 0 : i32
    %c0_i32_0 = arith.constant 0 : i32
    %c0_i32_1 = arith.constant 0 : i32
    return %c0_i32, %c0_i32_0 : i32, i32
  }
  func.func @transform_6(%arg0: i32, %arg1: i32) -> (i32, i32) {
    %c0_i32 = arith.constant 0 : i32
    %c0_i32_0 = arith.constant 0 : i32
    %c0_i32_1 = arith.constant 0 : i32
    return %c0_i32, %c0_i32_0 : i32, i32
  }
  func.func @transform_7(%arg0: i32, %arg1: i32) -> (i32, i32) {
    %c0_i32 = arith.constant 0 : i32
    %c0_i32_0 = arith.constant 0 : i32
    %c0_i32_1 = arith.constant 0 : i32
    return %c0_i32, %c0_i32_0 : i32, i32
  }
  func.func @transform_8(%arg0: i32, %arg1: i32) -> (i32, i32) {
    %c0_i32 = arith.constant 0 : i32
    %c0_i32_0 = arith.constant 0 : i32
    %c0_i32_1 = arith.constant 0 : i32
    return %c0_i32, %c0_i32_0 : i32, i32
  }
  func.func @transform_9(%arg0: i32, %arg1: i32) -> (i32, i32) {
    %c0_i32 = arith.constant 0 : i32
    %c0_i32_0 = arith.constant 0 : i32
    %c0_i32_1 = arith.constant 0 : i32
    return %c0_i32, %c0_i32_0 : i32, i32
  }
  func.func @transform_10(%arg0: i32, %arg1: i32) -> (i32, i32, i32) {
    %c0_i32 = arith.constant 0 : i32
    %c0_i32_0 = arith.constant 0 : i32
    return %arg0, %arg1, %c0_i32 : i32, i32, i32
  }
}

</mosaic_0001>

<llo_original>
// kernel: hubert_embedding_forward.2
$region0: #{hubert_embedding_forward.2}
  #allocation0 [shape = 'u32[]', space=smem, size = 0x4, offset = 0x4, fixed_abs, tag = 'smem constant byte address 0x4 - core index']
  #allocation1 [shape = 'u32[72,128]{1,0:T(1,128)}', space=vmem, size = 0x9000, scoped, tag = 'internal scratch']
  #allocation2 [shape = 'bf16[48,5]{1,0:T(8,128)(2,1)}', space=vmem, size = 0x3000, scoped, tag = 'scratch operand']
  %s0 = inlined_call_operand.vmem [shape: bf16[2,88,5], index: 0, kind: input, shape index: {}, may-alias: {0,1}]
  %s1 = inlined_call_operand.vmem [shape: bf16[2,88,5], index: 1, kind: input, shape index: {}, may-alias: {0,1}]
  %s2 = inlined_call_operand.vmem [shape: bf16[2,5,128], index: 2, kind: input, shape index: {}]
  %s3 = inlined_call_operand.vmem [shape: f32[1,128], index: 3, kind: input, shape index: {}]
  %s4 = inlined_call_operand.vmem [shape: f32[1,128], index: 4, kind: input, shape index: {}]
  %s5 = inlined_call_operand.vmem [shape: f32[1,128], index: 5, kind: input, shape index: {}]
  %s6 = inlined_call_operand.vmem [shape: bf16[2,80,128], index: 6, kind: output, shape index: {}]
  %s7 = sld [smem:[#allocation0]]
  $region57: #{hubert_embedding_forward.2} parent=0
    _
  %s9 = ssub.s32 1, %s7
  %s10 = scalar_select 0, %s9, %s7
  loop: start=0, step=1, limit=6
  $region2: #{hubert_embedding_forward.2} parent=0 // loop_pre_header
    _
  $region3: #{hubert_embedding_forward.2} parent=0 // loop_header
    %s12 = sphi 0, %s16
    %p13 = scmp.ge.s32.totalorder %s12, 6
    %s19 = sphi 0, %s31
    %s20 = sphi 0, %s27
    %s21 = sphi 0, %s19
    %s22 = sphi 0, %s20
    %s23 = sphi 0, %s21
    %s24 = sphi 0, %s22
    %s36 = sphi 0, %s38
    %s39 = sphi 0, %s36
    %s40 = sphi 0, %s39
    %s56 = sphi 0, %s40
    %s68 = sphi 0, %s70
    %s71 = sphi 0, %s68
    %s72 = sphi 0, %s71
    %s88 = sphi 0, %s72
    %s92 = sphi 0, %s92
    %s94 = sphi 0, %s92
    %s95 = sphi 0, %s94
    %s109 = sphi 0, %s95
    %s113 = sphi 0, %s113
    %s115 = sphi 0, %s113
    %s116 = sphi 0, %s115
    %s130 = sphi 0, %s116
    %s134 = sphi 0, %s134
    %s136 = sphi 0, %s134
    %s137 = sphi 0, %s136
    %s151 = sphi 0, %s137
    %s155 = sphi 0, %s155
    %s157 = sphi 0, %s155
    %s158 = sphi 0, %s157
    %s172 = sphi 0, %s158
    %s180 = sphi 0, %s182
    %s183 = sphi 0, %s180
    %s184 = sphi 0, %s183
    %s200 = sphi 0, %s184
  $region4: #{hubert_embedding_forward.2} parent=0 // loop_header_branch
    %15 = sbr.rel (%p13) target = $region8
  $region5: #{hubert_embedding_forward.2} parent=0 // loop_body
    %s17 = ssub.s32 %s12, 1
    %s18 = ssub.s32 %s12, 2
    %s25 = sadd.s32 1, %s20
    %p26 = scmp.ge.s32.totalorder %s25, 2
    %s27 = scalar_select %p26, 0, %s25
    %s28 = sadd.s32 1, %s19
    %s29 = scalar_select %p26, %s28, %s19
    %p30 = scmp.ge.s32.totalorder %s29, 2
    %s31 = scalar_select %p30, 0, %s29
    %s32 = ssub.s32 %s19, %s31
    %s33 = ssub.s32 %s20, %s27
    %s34 = sor.u32 %s32, %s33
    %p35 = scmp.eq.s32.totalorder %s34, 0
    %s37 = sadd.s32 %s36, 1
    %s38 = scalar_select %p35, %s36, %s37
    %p41 = pneg %p35
    %p42 = scmp.eq.s32.totalorder %s12, 3
    %p43 = por %p41, %p42
    %p44 = scmp.ne.s32.totalorder %s36, %s39
    %p45 = scmp.eq.s32.totalorder %s12, 0
    %p46 = por %p44, %p45
    %p47 = scmp.ne.s32.totalorder %s36, %s39
    %p48 = scmp.eq.s32.totalorder %s17, 3
    %p49 = por %p47, %p48
    %p50 = scmp.ne.s32.totalorder %s39, %s40
    %p51 = scmp.eq.s32.totalorder %s17, 0
    %p52 = por %p50, %p51
    %p53 = scmp.ne.s32.totalorder %s39, %s40
    %p54 = scmp.eq.s32.totalorder %s18, 3
    %p55 = por %p53, %p54
    %p57 = scmp.ne.s32.totalorder %s40, %s56
    %p58 = scmp.eq.s32.totalorder %s18, 0
    %p59 = por %p57, %p58
    %s60 = sadd.s32 %s20, 1
    %s61 = smul.u32 %s60, 5
    %s62 = sadd.s32 %s27, 1
    %s63 = smul.u32 %s62, 5
    %s64 = ssub.s32 %s19, %s31
    %s65 = ssub.s32 %s61, %s63
    %s66 = sor.u32 %s64, %s65
    %p67 = scmp.eq.s32.totalorder %s66, 0
    %s69 = sadd.s32 %s68, 1
    %s70 = scalar_select %p67, %s68, %s69
    %p73 = pneg %p67
    %p74 = scmp.eq.s32.totalorder %s12, 3
    %p75 = por %p73, %p74
    %p76 = scmp.ne.s32.totalorder %s68, %s71
    %p77 = scmp.eq.s32.totalorder %s12, 0
    %p78 = por %p76, %p77
    %p79 = scmp.ne.s32.totalorder %s68, %s71
    %p80 = scmp.eq.s32.totalorder %s17, 3
    %p81 = por %p79, %p80
    %p82 = scmp.ne.s32.totalorder %s71, %s72
    %p83 = scmp.eq.s32.totalorder %s17, 0
    %p84 = por %p82, %p83
    %p85 = scmp.ne.s32.totalorder %s71, %s72
    %p86 = scmp.eq.s32.totalorder %s18, 3
    %p87 = por %p85, %p86
    %p89 = scmp.ne.s32.totalorder %s72, %s88
    %p90 = scmp.eq.s32.totalorder %s18, 0
    %p91 = por %p89, %p90
    %s93 = sadd.s32 %s92, 1
    %p96 = scmp.eq.s32.totalorder %s12, 3
    %p97 = scmp.ne.s32.totalorder %s92, %s94
    %p98 = scmp.eq.s32.totalorder %s12, 0
    %p99 = por %p97, %p98
    %p100 = scmp.ne.s32.totalorder %s92, %s94
    %p101 = scmp.eq.s32.totalorder %s17, 3
    %p102 = por %p100, %p101
    %p103 = scmp.ne.s32.totalorder %s94, %s95
    %p104 = scmp.eq.s32.totalorder %s17, 0
    %p105 = por %p103, %p104
    %p106 = scmp.ne.s32.totalorder %s94, %s95
    %p107 = scmp.eq.s32.totalorder %s18, 3
    %p108 = por %p106, %p107
    %p110 = scmp.ne.s32.totalorder %s95, %s109
    %p111 = scmp.eq.s32.totalorder %s18, 0
    %p112 = por %p110, %p111
    %s114 = sadd.s32 %s113, 1
    %p117 = scmp.eq.s32.totalorder %s12, 3
    %p118 = scmp.ne.s32.totalorder %s113, %s115
    %p119 = scmp.eq.s32.totalorder %s12, 0
    %p120 = por %p118, %p119
    %p121 = scmp.ne.s32.totalorder %s113, %s115
    %p122 = scmp.eq.s32.totalorder %s17, 3
    %p123 = por %p121, %p122
    %p124 = scmp.ne.s32.totalorder %s115, %s116
    %p125 = scmp.eq.s32.totalorder %s17, 0
    %p126 = por %p124, %p125
    %p127 = scmp.ne.s32.totalorder %s115, %s116
    %p128 = scmp.eq.s32.totalorder %s18, 3
    %p129 = por %p127, %p128
    %p131 = scmp.ne.s32.totalorder %s116, %s130
    %p132 = scmp.eq.s32.totalorder %s18, 0
    %p133 = por %p131, %p132
    %s135 = sadd.s32 %s134, 1
    %p138 = scmp.eq.s32.totalorder %s12, 3
    %p139 = scmp.ne.s32.totalorder %s134, %s136
    %p140 = scmp.eq.s32.totalorder %s12, 0
    %p141 = por %p139, %p140
    %p142 = scmp.ne.s32.totalorder %s134, %s136
    %p143 = scmp.eq.s32.totalorder %s17, 3
    %p144 = por %p142, %p143
    %p145 = scmp.ne.s32.totalorder %s136, %s137
    %p146 = scmp.eq.s32.totalorder %s17, 0
    %p147 = por %p145, %p146
    %p148 = scmp.ne.s32.totalorder %s136, %s137
    %p149 = scmp.eq.s32.totalorder %s18, 3
    %p150 = por %p148, %p149
    %p152 = scmp.ne.s32.totalorder %s137, %s151
    %p153 = scmp.eq.s32.totalorder %s18, 0
    %p154 = por %p152, %p153
    %s156 = sadd.s32 %s155, 1
    %p159 = scmp.eq.s32.totalorder %s12, 3
    %p160 = scmp.ne.s32.totalorder %s155, %s157
    %p161 = scmp.eq.s32.totalorder %s12, 0
    %p162 = por %p160, %p161
    %p163 = scmp.ne.s32.totalorder %s155, %s157
    %p164 = scmp.eq.s32.totalorder %s17, 3
    %p165 = por %p163, %p164
    %p166 = scmp.ne.s32.totalorder %s157, %s158
    %p167 = scmp.eq.s32.totalorder %s17, 0
    %p168 = por %p166, %p167
    %p169 = scmp.ne.s32.totalorder %s157, %s158
    %p170 = scmp.eq.s32.totalorder %s18, 3
    %p171 = por %p169, %p170
    %p173 = scmp.ne.s32.totalorder %s158, %s172
    %p174 = scmp.eq.s32.totalorder %s18, 0
    %p175 = por %p173, %p174
    %s176 = ssub.s32 %s19, %s31
    %s177 = ssub.s32 %s20, %s27
    %s178 = sor.u32 %s176, %s177
    %p179 = scmp.eq.s32.totalorder %s178, 0
    %s181 = sadd.s32 %s180, 1
    %s182 = scalar_select %p179, %s180, %s181
    %p185 = pneg %p179
    %p186 = scmp.eq.s32.totalorder %s12, 3
    %p187 = por %p185, %p186
    %p188 = scmp.ne.s32.totalorder %s180, %s183
    %p189 = scmp.eq.s32.totalorder %s12, 0
    %p190 = por %p188, %p189
    %p191 = scmp.ne.s32.totalorder %s180, %s183
    %p192 = scmp.eq.s32.totalorder %s17, 3
    %p193 = por %p191, %p192
    %p194 = scmp.ne.s32.totalorder %s183, %s184
    %p195 = scmp.eq.s32.totalorder %s17, 0
    %p196 = por %p194, %p195
    %p197 = scmp.ne.s32.totalorder %s183, %s184
    %p198 = scmp.eq.s32.totalorder %s18, 3
    %p199 = por %p197, %p198
    %p201 = scmp.ne.s32.totalorder %s184, %s200
    %p202 = scmp.eq.s32.totalorder %s18, 0
    %p203 = por %p201, %p202
    %p204 = scmp.le.s32.totalorder 1, %s12
    %p205 = scmp.lt.s32.totalorder %s12, 5
    %p206 = pnand %p204, %p205
    %p207 = pneg %p206
    // Predicated region
    $region9: #{hubert_embedding_forward.2} parent=5 // pred_check
      _
    $region10: #{hubert_embedding_forward.2} parent=5 // pred_check_branch
      %209 = sbr.rel (%p206) target = $region12
    $region11: #{hubert_embedding_forward.2} parent=5 // pred_region
      %s210 = ssub.s32 %s12, 1
      // Predicated region
      $region13: #{hubert_embedding_forward.2} parent=11 // pred_check
        %p211 = pneg %p105
      $region14: #{hubert_embedding_forward.2} parent=11 // pred_check_branch
        %213 = sbr.rel (%p211) target = $region16
      $region15: #{hubert_embedding_forward.2} parent=11 // pred_region
        _
      $region16: #{hubert_embedding_forward.2} parent=11 // pred_fallthru
        _
      // Predicated region
      $region17: #{hubert_embedding_forward.2} parent=11 // pred_check
        %p214 = pneg %p126
      $region18: #{hubert_embedding_forward.2} parent=11 // pred_check_branch
        %216 = sbr.rel (%p214) target = $region20
      $region19: #{hubert_embedding_forward.2} parent=11 // pred_region
        _
      $region20: #{hubert_embedding_forward.2} parent=11 // pred_fallthru
        _
      // Predicated region
      $region21: #{hubert_embedding_forward.2} parent=11 // pred_check
        %p217 = pneg %p147
      $region22: #{hubert_embedding_forward.2} parent=11 // pred_check_branch
        %219 = sbr.rel (%p217) target = $region24
      $region23: #{hubert_embedding_forward.2} parent=11 // pred_region
        _
      $region24: #{hubert_embedding_forward.2} parent=11 // pred_fallthru
        _
      // Predicated region
      $region25: #{hubert_embedding_forward.2} parent=11 // pred_check
        %p220 = pneg %p168
      $region26: #{hubert_embedding_forward.2} parent=11 // pred_check_branch
        %222 = sbr.rel (%p220) target = $region28
      $region27: #{hubert_embedding_forward.2} parent=11 // pred_region
        _
      $region28: #{hubert_embedding_forward.2} parent=11 // pred_fallthru
        _
    $region12: #{hubert_embedding_forward.2} parent=5 // pred_fallthru
      _
    %p223 = scmp.lt.s32.totalorder %s12, 4
    // Predicated region
    $region29: #{hubert_embedding_forward.2} parent=5 // pred_check
      %p224 = pneg %p223
    $region30: #{hubert_embedding_forward.2} parent=5 // pred_check_branch
      %226 = sbr.rel (%p224) target = $region32
    $region31: #{hubert_embedding_forward.2} parent=5 // pred_region
      // Predicated region
      $region33: #{hubert_embedding_forward.2} parent=31 // pred_check
        %p227 = pneg %p46
      $region34: #{hubert_embedding_forward.2} parent=31 // pred_check_branch
        %229 = sbr.rel (%p227) target = $region36
      $region35: #{hubert_embedding_forward.2} parent=31 // pred_region
        %s230 = smul.u32 5, %s20
        %s231 = ssub.s32 11, %s230
        %p232 = scmp.lt.s32.totalorder %s231, 5
        %s233 = scalar_select %p232, %s231, 5
        %s234 = smul.u32 4, %s233
        %p235 = scmp.lt.s32.totalorder %s19, 1
        %s236 = scalar_select %p235, %s19, 1
        %p237 = scmp.lt.s32.totalorder %s230, 10
        %s238 = scalar_select %p237, %s230, 10
        %s239 = smul.addr %s236, 11
        %s240 = sadd.s32 %s238, %s239
        %s241 = smul.addr %s240, 4
        %s242 = scalar_lea.vmem %s0, %s241
        %s243 = smul.u32 5, %s20
        %s244 = ssub.s32 11, %s243
        %p245 = scmp.lt.s32.totalorder %s244, 5
        %s246 = scalar_select %p245, %s244, 5
        %s247 = smul.u32 4, %s246
      $region36: #{hubert_embedding_forward.2} parent=31 // pred_fallthru
        _
      // Predicated region
      $region37: #{hubert_embedding_forward.2} parent=31 // pred_check
        %p248 = pneg %p78
      $region38: #{hubert_embedding_forward.2} parent=31 // pred_check_branch
        %250 = sbr.rel (%p248) target = $region40
      $region39: #{hubert_embedding_forward.2} parent=31 // pred_region
        %s251 = sadd.s32 %s20, 1
        %s252 = smul.u32 %s251, 5
        %p253 = scmp.lt.s32.totalorder %s19, 1
        %s254 = scalar_select %p253, %s19, 1
        %p255 = scmp.lt.s32.totalorder %s252, 10
        %s256 = scalar_select %p255, %s252, 10
        %s257 = smul.addr %s254, 11
        %s258 = sadd.s32 %s256, %s257
        %s259 = smul.addr %s258, 4
        %s260 = scalar_lea.vmem %s1, %s259
        %s261 = sadd.s32 %s20, 1
        %s262 = smul.u32 %s261, 5
      $region40: #{hubert_embedding_forward.2} parent=31 // pred_fallthru
        _
    $region32: #{hubert_embedding_forward.2} parent=5 // pred_fallthru
      _
    %p263 = scmp.le.s32.totalorder 1, %s12
    %p264 = scmp.lt.s32.totalorder %s12, 5
    %p265 = pnand %p263, %p264
    %p266 = pneg %p265
    // Predicated region
    $region41: #{hubert_embedding_forward.2} parent=5 // pred_check
      _
    $region42: #{hubert_embedding_forward.2} parent=5 // pred_check_branch
      %268 = sbr.rel (%p265) target = $region44
    $region43: #{hubert_embedding_forward.2} parent=5 // pred_region
      %s269 = ssub.s32 %s12, 1
      %s270 = smul.u32 5, %s22
      %s271 = ssub.s32 11, %s270
      %p272 = scmp.lt.s32.totalorder %s271, 5
      %s273 = scalar_select %p272, %s271, 5
      %s274 = smul.u32 4, %s273
      %p275 = scmp.lt.s32.totalorder %s21, 1
      %s276 = scalar_select %p275, %s21, 1
      %p277 = scmp.lt.s32.totalorder %s270, 10
      %s278 = scalar_select %p277, %s270, 10
      %s279 = smul.addr %s276, 11
      %s280 = sadd.s32 %s278, %s279
      %s281 = smul.addr %s280, 4
      %s282 = scalar_lea.vmem %s0, %s281
      %p283 = pneg %p52
      %p284 = pneg %p49
      %s285 = sadd.s32 %s22, 1
      %s286 = smul.u32 %s285, 5
      %p287 = scmp.lt.s32.totalorder %s21, 1
      %s288 = scalar_select %p287, %s21, 1
      %p289 = scmp.lt.s32.totalorder %s286, 10
      %s290 = scalar_select %p289, %s286, 10
      %s291 = smul.addr %s288, 11
      %s292 = sadd.s32 %s290, %s291
      %s293 = smul.addr %s292, 4
      %s294 = scalar_lea.vmem %s1, %s293
      %p295 = pneg %p84
      %p296 = pneg %p81
      %p297 = pneg %p105
      %p298 = pneg %p102
      %p299 = pneg %p126
      %p300 = pneg %p123
      %p301 = pneg %p147
      %p302 = pneg %p144
      %p303 = pneg %p168
      %p304 = pneg %p165
      %p305 = pneg %p196
      %p306 = pneg %p193
      %s307 = smul.u32 5, %s22
      %p308 = scmp.lt.s32.totalorder %s21, 1
      %s309 = scalar_select %p308, %s21, 1
      %p310 = scmp.lt.s32.totalorder %s307, 9
      %s311 = scalar_select %p310, %s307, 9
      %s312 = smul.addr %s309, 10
      %s313 = sadd.s32 %s311, %s312
      %s314 = smul.addr %s313, 4
      %s315 = scalar_lea.vmem %s6, %s314
      %s316 = smul.u32 5, %s22
      %s317 = ssub.s32 11, %s316
      %p318 = scmp.lt.s32.totalorder %s317, 5
      %s319 = scalar_select %p318, %s317, 5
      %s320 = smul.u32 4, %s319
      %p321 = scmp.lt.s32.totalorder %s21, 1
      %s322 = scalar_select %p321, %s21, 1
      %p323 = scmp.lt.s32.totalorder %s316, 10
      %s324 = scalar_select %p323, %s316, 10
      %s325 = smul.addr %s322, 11
      %s326 = sadd.s32 %s324, %s325
      %s327 = smul.addr %s326, 4
      %s328 = scalar_lea.vmem %s0, %s327
      %s329 = smul.u32 5, %s22
      %s330 = ssub.s32 11, %s329
      %p331 = scmp.lt.s32.totalorder %s330, 5
      %s332 = scalar_select %p331, %s330, 5
      %s333 = smul.u32 4, %s332
      %s334 = sadd.s32 %s22, 1
      %s335 = smul.u32 %s334, 5
      %p336 = scmp.lt.s32.totalorder %s21, 1
      %s337 = scalar_select %p336, %s21, 1
      %p338 = scmp.lt.s32.totalorder %s335, 10
      %s339 = scalar_select %p338, %s335, 10
      %s340 = smul.addr %s337, 11
      %s341 = sadd.s32 %s339, %s340
      %s342 = smul.addr %s341, 4
      %s343 = scalar_lea.vmem %s1, %s342
      %s344 = sadd.s32 %s22, 1
      %s345 = smul.u32 %s344, 5
      %s346 = smul.u32 5, %s22
      %p347 = scmp.lt.s32.totalorder %s21, 1
      %s348 = scalar_select %p347, %s21, 1
      %p349 = scmp.lt.s32.totalorder %s346, 9
      %s350 = scalar_select %p349, %s346, 9
      %s351 = smul.addr %s348, 10
      %s352 = sadd.s32 %s350, %s351
      %s353 = smul.addr %s352, 4
      %s354 = scalar_lea.vmem %s6, %s353
      %s355 = smul.u32 5, %s22
      %v357 = vld [vmem:[%s328] sm:$0xf]
      %v358 = vld [vmem:[%s328 + $0x4] sm:$0xf]
      %v359 = vld [vmem:[%s328 + $0x8] sm:$0xf]
      %v360 = vld [vmem:[%s328 + $0xc] sm:$0xf]
      %v361 = vld [vmem:[%s328 + $0x10] sm:$0xf]
      %vm362 = vcmask 35840
      %363 = vst.msk [vmem:[#allocation2] sm:$0xf] %vm362, %v357
      %364 = vst.msk [vmem:[#allocation2 + $0x4] sm:$0xf] %vm362, %v358
      %365 = vst.msk [vmem:[#allocation2 + $0x8] sm:$0xf] %vm362, %v359
      %366 = vst.msk [vmem:[#allocation2 + $0xc] sm:$0xf] %vm362, %v360
      %367 = vst.msk [vmem:[#allocation2 + $0x10] sm:$0xf] %vm362, %v361
      %v368 = vld [vmem:[%s343] sm:$0xf]
      %369 = vst.msk [vmem:[#allocation2 + $0x14] sm:$0xf] %vm362, %v368
      %v370 = vld [vmem:[#allocation2] sm:$0xf]
      %v371 = vld [vmem:[#allocation2 + $0x4] sm:$0xf]
      %v372 = vld [vmem:[#allocation2 + $0x8] sm:$0xf]
      %v373 = vld [vmem:[#allocation2 + $0xc] sm:$0xf]
      %v374 = vld [vmem:[#allocation2 + $0x10] sm:$0xf]
      %v375 = vld [vmem:[#allocation2 + $0x14] sm:$0xf]
      %v376 = vld [vmem:[%s2] sm:$0x7]
      %v383 = vunpack.c.l.b16 %v370
      %v384 = vunpack.c.l.b16 %v371
      %v385 = vunpack.c.l.b16 %v372
      %v386 = vunpack.c.l.b16 %v373
      %v387 = vunpack.c.l.b16 %v374
      %v388 = vunpack.c.l.b16 %v375
      %v389 = vpack.c.b16 %v384, %v383
      %v390 = vpack.c.b16 %v386, %v385
      %v391 = vpack.c.b16 %v388, %v387
      %vm392 = vcmask 39936
      %v394 = vsel %vm392, %v389, 0
      %v397 = vsel %vm392, %v390, 0
      %v400 = vsel %vm392, %v391, 0
      %vm402 = vcmask 1041408
      %vm403 = vcmask 1042432
      %v404 = vsel %vm402, 4294967295, 65535
      %v405 = vsel %vm403, %v404, 0
      %v407 = vand.u32 %v376, %v405
      %409 = vmatpush.bf16.msra.mxu0 0
      %410 = vmatpush.bf16.msra.mxu0 0
      %411 = vmatpush.bf16.msra.mxu0 0
      %412 = vmatpush.bf16.msra.mxu0 0
      %413 = vmatpush.bf16.msra.mxu0 0
      %414 = vmatpush.bf16.msra.mxu0 0
      %415 = vmatpush.bf16.msra.mxu0 0
      %416 = vmatpush.bf16.msra.mxu0 %v407
      %417 = vmatmul.bf16.gmra.mxu0 %v394
      %v418 = vpop.f32.mrf.mxu0
      %v419 = vadd.f32 0.0, %v418
      %v420 = vpop.f32.mrf.mxu0
      %v421 = vadd.f32 0.0, %v420
      %422 = vmatmul.bf16.gmra.mxu0 %v397
      %v423 = vpop.f32.mrf.mxu0
      %v424 = vadd.f32 0.0, %v423
      %v425 = vpop.f32.mrf.mxu0
      %v426 = vadd.f32 0.0, %v425
      %427 = vmatmul.bf16.gmra.mxu0 %v400
      %v428 = vpop.f32.mrf.mxu0
      %v429 = vadd.f32 0.0, %v428
      %v430 = vpop.f32.mrf.mxu0
      %431 = vdwg.mxu0
      %v432 = vadd.f32 %v419, 0.0
      %v433 = vadd.f32 %v421, 0.0
      %v434 = vadd.f32 %v424, 0.0
      %v435 = vadd.f32 %v426, 0.0
      %v436 = vadd.f32 %v429, 0.0
      %s437 = scalar_lea.vmem %s2, 4
      %v438 = vld [vmem:[%s437] sm:$0x7]
      %v440 = vand.u32 %v438, %v405
      %442 = vmatpush.bf16.msra.mxu0 0
      %443 = vmatpush.bf16.msra.mxu0 0
      %444 = vmatpush.bf16.msra.mxu0 0
      %445 = vmatpush.bf16.msra.mxu0 0
      %446 = vmatpush.bf16.msra.mxu0 0
      %447 = vmatpush.bf16.msra.mxu0 0
      %448 = vmatpush.bf16.msra.mxu0 0
      %449 = vmatpush.bf16.msra.mxu0 %v440
      %450 = vmatmul.bf16.gmra.mxu0 %v394
      %v451 = vpop.f32.mrf.mxu0
      %v452 = vadd.f32 0.0, %v451
      %v453 = vpop.f32.mrf.mxu0
      %v454 = vadd.f32 0.0, %v453
      %455 = vmatmul.bf16.gmra.mxu0 %v397
      %v456 = vpop.f32.mrf.mxu0
      %v457 = vadd.f32 0.0, %v456
      %v458 = vpop.f32.mrf.mxu0
      %v459 = vadd.f32 0.0, %v458
      %460 = vmatmul.bf16.gmra.mxu0 %v400
      %v461 = vpop.f32.mrf.mxu0
      %v462 = vadd.f32 0.0, %v461
      %v463 = vpop.f32.mrf.mxu0
      %v464 = vadd.f32 0.0, %v463
      %465 = vdwg.mxu0
      %vm472 = vcmask 1046528
      %v473 = vrot.slane %v452, 1
      %v474 = vrot.slane %v454, 1
      %v475 = vsel %vm472, %v473, %v474
      %v476 = vrot.slane %v457, 1
      %v477 = vsel %vm472, %v474, %v476
      %v478 = vrot.slane %v459, 1
      %v479 = vsel %vm472, %v476, %v478
      %v480 = vrot.slane %v462, 1
      %v481 = vsel %vm472, %v478, %v480
      %v482 = vrot.slane %v464, 1
      %v483 = vsel %vm472, %v480, %v482
      %v489 = vadd.f32 %v432, %v475
      %v490 = vadd.f32 %v433, %v477
      %v491 = vadd.f32 %v434, %v479
      %v492 = vadd.f32 %v435, %v481
      %v493 = vadd.f32 %v436, %v483
      %v494 = vld [vmem:[%s3] sm:$0x1]
      %v496 = vperm.slane %v494, 0
      %v498 = vadd.f32 %v489, %v496
      %v499 = vadd.f32 %v490, %v496
      %v500 = vadd.f32 %v491, %v496
      %v501 = vadd.f32 %v492, %v496
      %v502 = vadd.f32 %v493, %v496
      %v503 = vld [vmem:[%s4] sm:$0x1]
      %v504 = vld [vmem:[%s5] sm:$0x1]
      %505 = vadd.xlane.f32.xlu0 %v498
      %v506 = vpop.xlane.xlu0 %505
      %507 = vadd.xlane.f32.xlu0 %v499
      %v508 = vpop.xlane.xlu0 %507
      %509 = vadd.xlane.f32.xlu0 %v500
      %v510 = vpop.xlane.xlu0 %509
      %511 = vadd.xlane.f32.xlu0 %v501
      %v512 = vpop.xlane.xlu0 %511
      %513 = vadd.xlane.f32.xlu0 %v502
      %v514 = vpop.xlane.xlu0 %513
      %v515 = vmul.f32 %v506, 0.0625
      %v516 = vmul.f32 %v508, 0.0625
      %v517 = vmul.f32 %v510, 0.0625
      %v518 = vmul.f32 %v512, 0.0625
      %v519 = vmul.f32 %v514, 0.0625
      %v520 = vsub.f32 %v498, %v515
      %v521 = vsub.f32 %v499, %v516
      %v522 = vsub.f32 %v500, %v517
      %v523 = vsub.f32 %v501, %v518
      %v524 = vsub.f32 %v502, %v519
      %v525 = vlaneseq
      %v526 = vand.u32 %v525, 127
      %vm527 = vcmp.lt.s32.totalorder %v526, 16
      %v528 = vsel %vm527, %v520, 0.0
      %v529 = vsel %vm527, %v521, 0.0
      %v530 = vsel %vm527, %v522, 0.0
      %v531 = vsel %vm527, %v523, 0.0
      %v532 = vsel %vm527, %v524, 0.0
      %v533 = vmul.f32 %v528, %v528
      %v534 = vmul.f32 %v529, %v529
      %v535 = vmul.f32 %v530, %v530
      %v536 = vmul.f32 %v531, %v531
      %v537 = vmul.f32 %v532, %v532
      %538 = vadd.xlane.f32.xlu0 %v533
      %v539 = vpop.xlane.xlu0 %538
      %540 = vadd.xlane.f32.xlu0 %v534
      %v541 = vpop.xlane.xlu0 %540
      %542 = vadd.xlane.f32.xlu0 %v535
      %v543 = vpop.xlane.xlu0 %542
      %544 = vadd.xlane.f32.xlu0 %v536
      %v545 = vpop.xlane.xlu0 %544
      %546 = vadd.xlane.f32.xlu0 %v537
      %v547 = vpop.xlane.xlu0 %546
      %v548 = vmul.f32 %v539, 0.0625
      %v549 = vmul.f32 %v541, 0.0625
      %v550 = vmul.f32 %v543, 0.0625
      %v551 = vmul.f32 %v545, 0.0625
      %v552 = vmul.f32 %v547, 0.0625
      %v553 = vadd.f32 %v548, 1e-05
      %v554 = vadd.f32 %v549, 1e-05
      %v555 = vadd.f32 %v550, 1e-05
      %v556 = vadd.f32 %v551, 1e-05
      %v557 = vadd.f32 %v552, 1e-05
      %v558 = vrsqrt.pop %v553
      %v559 = vmul.f32 %v558, %v553
      %v560 = vmul.f32 %v559, %v558
      %v561 = vmul.f32 0.5, %v560
      %v562 = vsub.f32 1.5, %v561
      %v563 = vmul.f32 %v558, %v562
      %vm564 = vweird.f32 %v553
      %vm565 = vweird.f32 %v558
      %vm566 = vmor %vm564, %vm565
      %v567 = vsel %vm566, %v558, %v563
      %v568 = vrsqrt.pop %v554
      %v569 = vmul.f32 %v568, %v554
      %v570 = vmul.f32 %v569, %v568
      %v571 = vmul.f32 0.5, %v570
      %v572 = vsub.f32 1.5, %v571
      %v573 = vmul.f32 %v568, %v572
      %vm574 = vweird.f32 %v554
      %vm575 = vweird.f32 %v568
      %vm576 = vmor %vm574, %vm575
      %v577 = vsel %vm576, %v568, %v573
      %v578 = vrsqrt.pop %v555
      %v579 = vmul.f32 %v578, %v555
      %v580 = vmul.f32 %v579, %v578
      %v581 = vmul.f32 0.5, %v580
      %v582 = vsub.f32 1.5, %v581
      %v583 = vmul.f32 %v578, %v582
      %vm584 = vweird.f32 %v555
      %vm585 = vweird.f32 %v578
      %vm586 = vmor %vm584, %vm585
      %v587 = vsel %vm586, %v578, %v583
      %v588 = vrsqrt.pop %v556
      %v589 = vmul.f32 %v588, %v556
      %v590 = vmul.f32 %v589, %v588
      %v591 = vmul.f32 0.5, %v590
      %v592 = vsub.f32 1.5, %v591
      %v593 = vmul.f32 %v588, %v592
      %vm594 = vweird.f32 %v556
      %vm595 = vweird.f32 %v588
      %vm596 = vmor %vm594, %vm595
      %v597 = vsel %vm596, %v588, %v593
      %v598 = vrsqrt.pop %v557
      %v599 = vmul.f32 %v598, %v557
      %v600 = vmul.f32 %v599, %v598
      %v601 = vmul.f32 0.5, %v600
      %v602 = vsub.f32 1.5, %v601
      %v603 = vmul.f32 %v598, %v602
      %vm604 = vweird.f32 %v557
      %vm605 = vweird.f32 %v598
      %vm606 = vmor %vm604, %vm605
      %v607 = vsel %vm606, %v598, %v603
      %v608 = vmul.f32 %v528, %v567
      %v609 = vmul.f32 %v529, %v577
      %v610 = vmul.f32 %v530, %v587
      %v611 = vmul.f32 %v531, %v597
      %v612 = vmul.f32 %v532, %v607
      %v614 = vperm.slane %v503, 0
      %v616 = vmul.f32 %v608, %v614
      %v617 = vmul.f32 %v609, %v614
      %v618 = vmul.f32 %v610, %v614
      %v619 = vmul.f32 %v611, %v614
      %v620 = vmul.f32 %v612, %v614
      %v622 = vperm.slane %v504, 0
      %v624 = vadd.f32 %v616, %v622
      %v625 = vadd.f32 %v617, %v622
      %v626 = vadd.f32 %v618, %v622
      %v627 = vadd.f32 %v619, %v622
      %v628 = vadd.f32 %v620, %v622
      %v629 = vmul.f32 %v624, 0.5
      %v630 = vmul.f32 %v625, 0.5
      %v631 = vmul.f32 %v626, 0.5
      %v632 = vmul.f32 %v627, 0.5
      %v633 = vmul.f32 %v628, 0.5
      %v634 = vmul.f32 %v624, %v624
      %v635 = vmul.f32 %v625, %v625
      %v636 = vmul.f32 %v626, %v626
      %v637 = vmul.f32 %v627, %v627
      %v638 = vmul.f32 %v628, %v628
      %v639 = vmul.f32 %v634, %v624
      %v640 = vmul.f32 %v635, %v625
      %v641 = vmul.f32 %v636, %v626
      %v642 = vmul.f32 %v637, %v627
      %v643 = vmul.f32 %v638, %v628
      %v644 = vmul.f32 %v639, 0.044715
      %v645 = vmul.f32 %v640, 0.044715
      %v646 = vmul.f32 %v641, 0.044715
      %v647 = vmul.f32 %v642, 0.044715
      %v648 = vmul.f32 %v643, 0.044715
      %v649 = vadd.f32 %v624, %v644
      %v650 = vadd.f32 %v625, %v645
      %v651 = vadd.f32 %v626, %v646
      %v652 = vadd.f32 %v627, %v647
      %v653 = vadd.f32 %v628, %v648
      %v654 = vmul.f32 %v649, 0.7978846
      %v655 = vmul.f32 %v650, 0.7978846
      %v656 = vmul.f32 %v651, 0.7978846
      %v657 = vmul.f32 %v652, 0.7978846
      %v658 = vmul.f32 %v653, 0.7978846
      %v659 = vtanh.pop %v654
      %v660 = vtanh.pop %v655
      %v661 = vtanh.pop %v656
      %v662 = vtanh.pop %v657
      %v663 = vtanh.pop %v658
      %v664 = vadd.f32 %v659, 1.0
      %v665 = vadd.f32 %v660, 1.0
      %v666 = vadd.f32 %v661, 1.0
      %v667 = vadd.f32 %v662, 1.0
      %v668 = vadd.f32 %v663, 1.0
      %v669 = vmul.f32 %v629, %v664
      %v670 = vmul.f32 %v630, %v665
      %v671 = vmul.f32 %v631, %v666
      %v672 = vmul.f32 %v632, %v667
      %v673 = vmul.f32 %v633, %v668
      %v674 = vpack.c.bf16 %v669, %v669
      %v675 = vpack.c.bf16 %v670, %v670
      %v676 = vpack.c.bf16 %v671, %v671
      %v677 = vpack.c.bf16 %v672, %v672
      %v678 = vpack.c.bf16 %v673, %v673
      %679 = vst [vmem:[%s354] sm:$0xf] %v674
      %680 = vst [vmem:[%s354 + $0x4] sm:$0xf] %v675
      %681 = vst [vmem:[%s354 + $0x8] sm:$0xf] %v676
      %682 = vst [vmem:[%s354 + $0xc] sm:$0xf] %v677
      %683 = vst [vmem:[%s354 + $0x10] sm:$0xf] %v678
      %s684 = smul.u32 5, %s22
      %p685 = scmp.lt.s32.totalorder %s21, 1
      %s686 = scalar_select %p685, %s21, 1
      %p687 = scmp.lt.s32.totalorder %s684, 9
      %s688 = scalar_select %p687, %s684, 9
      %s689 = smul.addr %s686, 10
      %s690 = sadd.s32 %s688, %s689
      %s691 = smul.addr %s690, 4
      %s692 = scalar_lea.vmem %s6, %s691
      // Predicated region
      $region45: #{hubert_embedding_forward.2} parent=43 // pred_check
        %p693 = pneg %p193
      $region46: #{hubert_embedding_forward.2} parent=43 // pred_check_branch
        %695 = sbr.rel (%p693) target = $region48
      $region47: #{hubert_embedding_forward.2} parent=43 // pred_region
        %s696 = smul.u32 5, %s22
      $region48: #{hubert_embedding_forward.2} parent=43 // pred_fallthru
        _
    $region44: #{hubert_embedding_forward.2} parent=5 // pred_fallthru
      _
    %p697 = scmp.le.s32.totalorder 2, %s12
    // Predicated region
    $region49: #{hubert_embedding_forward.2} parent=5 // pred_check
      %p698 = pneg %p697
    $region50: #{hubert_embedding_forward.2} parent=5 // pred_check_branch
      %700 = sbr.rel (%p698) target = $region52
    $region51: #{hubert_embedding_forward.2} parent=5 // pred_region
      %s701 = ssub.s32 %s12, 2
      // Predicated region
      $region53: #{hubert_embedding_forward.2} parent=51 // pred_check
        %p702 = pneg %p199
      $region54: #{hubert_embedding_forward.2} parent=51 // pred_check_branch
        %704 = sbr.rel (%p702) target = $region56
      $region55: #{hubert_embedding_forward.2} parent=51 // pred_region
        %s705 = smul.u32 5, %s24
        %p706 = scmp.lt.s32.totalorder %s23, 1
        %s707 = scalar_select %p706, %s23, 1
        %p708 = scmp.lt.s32.totalorder %s705, 9
        %s709 = scalar_select %p708, %s705, 9
        %s710 = smul.addr %s707, 10
        %s711 = sadd.s32 %s709, %s710
        %s712 = smul.addr %s711, 4
        %s713 = scalar_lea.vmem %s6, %s712
      $region56: #{hubert_embedding_forward.2} parent=51 // pred_fallthru
        _
    $region52: #{hubert_embedding_forward.2} parent=5 // pred_fallthru
      _
  $region6: #{hubert_embedding_forward.2} parent=0 // loop_footer
    %s16 = sadd.s32 1, %s12
  $region7: #{hubert_embedding_forward.2} parent=0 // loop_footer_branch
    %11 = sbr.rel target = $region3
  $region8: #{hubert_embedding_forward.2} parent=0 // loop_exit
    _

// kernel: hubert_embedding_forward.3
$region0: #{hubert_embedding_forward.3}
  #allocation0 [shape = 'u32[]', space=smem, size = 0x4, offset = 0x4, fixed_abs, tag = 'smem constant byte address 0x4 - core index']
  #allocation1 [shape = 'u32[72,128]{1,0:T(1,128)}', space=vmem, size = 0x9000, scoped, tag = 'internal scratch']
  #allocation2 [shape = 'bf16[24,256]{1,0:T(8,128)(2,1)}', space=vmem, size = 0x3000, scoped, tag = 'scratch operand']
  %s0 = inlined_call_operand.vmem [shape: bf16[2,40,256], index: 0, kind: input, shape index: {}, may-alias: {0,1}]
  %s1 = inlined_call_operand.vmem [shape: bf16[2,40,256], index: 1, kind: input, shape index: {}, may-alias: {0,1}]
  %s2 = inlined_call_operand.vmem [shape: bf16[2,256,128], index: 2, kind: input, shape index: {}]
  %s3 = inlined_call_operand.vmem [shape: f32[1,128], index: 3, kind: input, shape index: {}]
  %s4 = inlined_call_operand.vmem [shape: f32[1,128], index: 4, kind: input, shape index: {}, may-alias: {4,6}]
  %s5 = inlined_call_operand.vmem [shape: f32[1,128], index: 5, kind: input, shape index: {}, may-alias: {5,7}]
  %s6 = inlined_call_operand.vmem [shape: f32[1,128], index: 6, kind: input, shape index: {}, may-alias: {4,6}]
  %s7 = inlined_call_operand.vmem [shape: f32[1,128], index: 7, kind: input, shape index: {}, may-alias: {5,7}]
  %s8 = inlined_call_operand.vmem [shape: bf16[128,128], index: 8, kind: input, shape index: {}]
  %s9 = inlined_call_operand.vmem [shape: f32[1,128], index: 9, kind: input, shape index: {}]
  %s10 = inlined_call_operand.vmem [shape: bf16[2,32,128], index: 10, kind: output, shape index: {}]
  %s11 = sld [smem:[#allocation0]]
  $region73: #{hubert_embedding_forward.3} parent=0
    _
  %s13 = ssub.s32 1, %s11
  %s14 = scalar_select 0, %s13, %s11
  loop: start=0, step=1, limit=6
  $region2: #{hubert_embedding_forward.3} parent=0 // loop_pre_header
    _
  $region3: #{hubert_embedding_forward.3} parent=0 // loop_header
    %s16 = sphi 0, %s20
    %p17 = scmp.ge.s32.totalorder %s16, 6
    %s23 = sphi 0, %s35
    %s24 = sphi 0, %s31
    %s25 = sphi 0, %s23
    %s26 = sphi 0, %s24
    %s27 = sphi 0, %s25
    %s28 = sphi 0, %s26
    %s40 = sphi 0, %s42
    %s43 = sphi 0, %s40
    %s44 = sphi 0, %s43
    %s60 = sphi 0, %s44
    %s72 = sphi 0, %s74
    %s75 = sphi 0, %s72
    %s76 = sphi 0, %s75
    %s92 = sphi 0, %s76
    %s96 = sphi 0, %s96
    %s98 = sphi 0, %s96
    %s99 = sphi 0, %s98
    %s113 = sphi 0, %s99
    %s117 = sphi 0, %s117
    %s119 = sphi 0, %s117
    %s120 = sphi 0, %s119
    %s134 = sphi 0, %s120
    %s138 = sphi 0, %s138
    %s140 = sphi 0, %s138
    %s141 = sphi 0, %s140
    %s155 = sphi 0, %s141
    %s159 = sphi 0, %s159
    %s161 = sphi 0, %s159
    %s162 = sphi 0, %s161
    %s176 = sphi 0, %s162
    %s180 = sphi 0, %s180
    %s182 = sphi 0, %s180
    %s183 = sphi 0, %s182
    %s197 = sphi 0, %s183
    %s201 = sphi 0, %s201
    %s203 = sphi 0, %s201
    %s204 = sphi 0, %s203
    %s218 = sphi 0, %s204
    %s222 = sphi 0, %s222
    %s224 = sphi 0, %s222
    %s225 = sphi 0, %s224
    %s239 = sphi 0, %s225
    %s243 = sphi 0, %s243
    %s245 = sphi 0, %s243
    %s246 = sphi 0, %s245
    %s260 = sphi 0, %s246
    %s268 = sphi 0, %s270
    %s271 = sphi 0, %s268
    %s272 = sphi 0, %s271
    %s288 = sphi 0, %s272
  $region4: #{hubert_embedding_forward.3} parent=0 // loop_header_branch
    %19 = sbr.rel (%p17) target = $region8
  $region5: #{hubert_embedding_forward.3} parent=0 // loop_body
    %s21 = ssub.s32 %s16, 1
    %s22 = ssub.s32 %s16, 2
    %s29 = sadd.s32 1, %s24
    %p30 = scmp.ge.s32.totalorder %s29, 2
    %s31 = scalar_select %p30, 0, %s29
    %s32 = sadd.s32 1, %s23
    %s33 = scalar_select %p30, %s32, %s23
    %p34 = scmp.ge.s32.totalorder %s33, 2
    %s35 = scalar_select %p34, 0, %s33
    %s36 = ssub.s32 %s23, %s35
    %s37 = ssub.s32 %s24, %s31
    %s38 = sor.u32 %s36, %s37
    %p39 = scmp.eq.s32.totalorder %s38, 0
    %s41 = sadd.s32 %s40, 1
    %s42 = scalar_select %p39, %s40, %s41
    %p45 = pneg %p39
    %p46 = scmp.eq.s32.totalorder %s16, 3
    %p47 = por %p45, %p46
    %p48 = scmp.ne.s32.totalorder %s40, %s43
    %p49 = scmp.eq.s32.totalorder %s16, 0
    %p50 = por %p48, %p49
    %p51 = scmp.ne.s32.totalorder %s40, %s43
    %p52 = scmp.eq.s32.totalorder %s21, 3
    %p53 = por %p51, %p52
    %p54 = scmp.ne.s32.totalorder %s43, %s44
    %p55 = scmp.eq.s32.totalorder %s21, 0
    %p56 = por %p54, %p55
    %p57 = scmp.ne.s32.totalorder %s43, %s44
    %p58 = scmp.eq.s32.totalorder %s22, 3
    %p59 = por %p57, %p58
    %p61 = scmp.ne.s32.totalorder %s44, %s60
    %p62 = scmp.eq.s32.totalorder %s22, 0
    %p63 = por %p61, %p62
    %s64 = sadd.s32 %s24, 1
    %s65 = smul.u32 %s64, 2
    %s66 = sadd.s32 %s31, 1
    %s67 = smul.u32 %s66, 2
    %s68 = ssub.s32 %s23, %s35
    %s69 = ssub.s32 %s65, %s67
    %s70 = sor.u32 %s68, %s69
    %p71 = scmp.eq.s32.totalorder %s70, 0
    %s73 = sadd.s32 %s72, 1
    %s74 = scalar_select %p71, %s72, %s73
    %p77 = pneg %p71
    %p78 = scmp.eq.s32.totalorder %s16, 3
    %p79 = por %p77, %p78
    %p80 = scmp.ne.s32.totalorder %s72, %s75
    %p81 = scmp.eq.s32.totalorder %s16, 0
    %p82 = por %p80, %p81
    %p83 = scmp.ne.s32.totalorder %s72, %s75
    %p84 = scmp.eq.s32.totalorder %s21, 3
    %p85 = por %p83, %p84
    %p86 = scmp.ne.s32.totalorder %s75, %s76
    %p87 = scmp.eq.s32.totalorder %s21, 0
    %p88 = por %p86, %p87
    %p89 = scmp.ne.s32.totalorder %s75, %s76
    %p90 = scmp.eq.s32.totalorder %s22, 3
    %p91 = por %p89, %p90
    %p93 = scmp.ne.s32.totalorder %s76, %s92
    %p94 = scmp.eq.s32.totalorder %s22, 0
    %p95 = por %p93, %p94
    %s97 = sadd.s32 %s96, 1
    %p100 = scmp.eq.s32.totalorder %s16, 3
    %p101 = scmp.ne.s32.totalorder %s96, %s98
    %p102 = scmp.eq.s32.totalorder %s16, 0
    %p103 = por %p101, %p102
    %p104 = scmp.ne.s32.totalorder %s96, %s98
    %p105 = scmp.eq.s32.totalorder %s21, 3
    %p106 = por %p104, %p105
    %p107 = scmp.ne.s32.totalorder %s98, %s99
    %p108 = scmp.eq.s32.totalorder %s21, 0
    %p109 = por %p107, %p108
    %p110 = scmp.ne.s32.totalorder %s98, %s99
    %p111 = scmp.eq.s32.totalorder %s22, 3
    %p112 = por %p110, %p111
    %p114 = scmp.ne.s32.totalorder %s99, %s113
    %p115 = scmp.eq.s32.totalorder %s22, 0
    %p116 = por %p114, %p115
    %s118 = sadd.s32 %s117, 1
    %p121 = scmp.eq.s32.totalorder %s16, 3
    %p122 = scmp.ne.s32.totalorder %s117, %s119
    %p123 = scmp.eq.s32.totalorder %s16, 0
    %p124 = por %p122, %p123
    %p125 = scmp.ne.s32.totalorder %s117, %s119
    %p126 = scmp.eq.s32.totalorder %s21, 3
    %p127 = por %p125, %p126
    %p128 = scmp.ne.s32.totalorder %s119, %s120
    %p129 = scmp.eq.s32.totalorder %s21, 0
    %p130 = por %p128, %p129
    %p131 = scmp.ne.s32.totalorder %s119, %s120
    %p132 = scmp.eq.s32.totalorder %s22, 3
    %p133 = por %p131, %p132
    %p135 = scmp.ne.s32.totalorder %s120, %s134
    %p136 = scmp.eq.s32.totalorder %s22, 0
    %p137 = por %p135, %p136
    %s139 = sadd.s32 %s138, 1
    %p142 = scmp.eq.s32.totalorder %s16, 3
    %p143 = scmp.ne.s32.totalorder %s138, %s140
    %p144 = scmp.eq.s32.totalorder %s16, 0
    %p145 = por %p143, %p144
    %p146 = scmp.ne.s32.totalorder %s138, %s140
    %p147 = scmp.eq.s32.totalorder %s21, 3
    %p148 = por %p146, %p147
    %p149 = scmp.ne.s32.totalorder %s140, %s141
    %p150 = scmp.eq.s32.totalorder %s21, 0
    %p151 = por %p149, %p150
    %p152 = scmp.ne.s32.totalorder %s140, %s141
    %p153 = scmp.eq.s32.totalorder %s22, 3
    %p154 = por %p152, %p153
    %p156 = scmp.ne.s32.totalorder %s141, %s155
    %p157 = scmp.eq.s32.totalorder %s22, 0
    %p158 = por %p156, %p157
    %s160 = sadd.s32 %s159, 1
    %p163 = scmp.eq.s32.totalorder %s16, 3
    %p164 = scmp.ne.s32.totalorder %s159, %s161
    %p165 = scmp.eq.s32.totalorder %s16, 0
    %p166 = por %p164, %p165
    %p167 = scmp.ne.s32.totalorder %s159, %s161
    %p168 = scmp.eq.s32.totalorder %s21, 3
    %p169 = por %p167, %p168
    %p170 = scmp.ne.s32.totalorder %s161, %s162
    %p171 = scmp.eq.s32.totalorder %s21, 0
    %p172 = por %p170, %p171
    %p173 = scmp.ne.s32.totalorder %s161, %s162
    %p174 = scmp.eq.s32.totalorder %s22, 3
    %p175 = por %p173, %p174
    %p177 = scmp.ne.s32.totalorder %s162, %s176
    %p178 = scmp.eq.s32.totalorder %s22, 0
    %p179 = por %p177, %p178
    %s181 = sadd.s32 %s180, 1
    %p184 = scmp.eq.s32.totalorder %s16, 3
    %p185 = scmp.ne.s32.totalorder %s180, %s182
    %p186 = scmp.eq.s32.totalorder %s16, 0
    %p187 = por %p185, %p186
    %p188 = scmp.ne.s32.totalorder %s180, %s182
    %p189 = scmp.eq.s32.totalorder %s21, 3
    %p190 = por %p188, %p189
    %p191 = scmp.ne.s32.totalorder %s182, %s183
    %p192 = scmp.eq.s32.totalorder %s21, 0
    %p193 = por %p191, %p192
    %p194 = scmp.ne.s32.totalorder %s182, %s183
    %p195 = scmp.eq.s32.totalorder %s22, 3
    %p196 = por %p194, %p195
    %p198 = scmp.ne.s32.totalorder %s183, %s197
    %p199 = scmp.eq.s32.totalorder %s22, 0
    %p200 = por %p198, %p199
    %s202 = sadd.s32 %s201, 1
    %p205 = scmp.eq.s32.totalorder %s16, 3
    %p206 = scmp.ne.s32.totalorder %s201, %s203
    %p207 = scmp.eq.s32.totalorder %s16, 0
    %p208 = por %p206, %p207
    %p209 = scmp.ne.s32.totalorder %s201, %s203
    %p210 = scmp.eq.s32.totalorder %s21, 3
    %p211 = por %p209, %p210
    %p212 = scmp.ne.s32.totalorder %s203, %s204
    %p213 = scmp.eq.s32.totalorder %s21, 0
    %p214 = por %p212, %p213
    %p215 = scmp.ne.s32.totalorder %s203, %s204
    %p216 = scmp.eq.s32.totalorder %s22, 3
    %p217 = por %p215, %p216
    %p219 = scmp.ne.s32.totalorder %s204, %s218
    %p220 = scmp.eq.s32.totalorder %s22, 0
    %p221 = por %p219, %p220
    %s223 = sadd.s32 %s222, 1
    %p226 = scmp.eq.s32.totalorder %s16, 3
    %p227 = scmp.ne.s32.totalorder %s222, %s224
    %p228 = scmp.eq.s32.totalorder %s16, 0
    %p229 = por %p227, %p228
    %p230 = scmp.ne.s32.totalorder %s222, %s224
    %p231 = scmp.eq.s32.totalorder %s21, 3
    %p232 = por %p230, %p231
    %p233 = scmp.ne.s32.totalorder %s224, %s225
    %p234 = scmp.eq.s32.totalorder %s21, 0
    %p235 = por %p233, %p234
    %p236 = scmp.ne.s32.totalorder %s224, %s225
    %p237 = scmp.eq.s32.totalorder %s22, 3
    %p238 = por %p236, %p237
    %p240 = scmp.ne.s32.totalorder %s225, %s239
    %p241 = scmp.eq.s32.totalorder %s22, 0
    %p242 = por %p240, %p241
    %s244 = sadd.s32 %s243, 1
    %p247 = scmp.eq.s32.totalorder %s16, 3
    %p248 = scmp.ne.s32.totalorder %s243, %s245
    %p249 = scmp.eq.s32.totalorder %s16, 0
    %p250 = por %p248, %p249
    %p251 = scmp.ne.s32.totalorder %s243, %s245
    %p252 = scmp.eq.s32.totalorder %s21, 3
    %p253 = por %p251, %p252
    %p254 = scmp.ne.s32.totalorder %s245, %s246
    %p255 = scmp.eq.s32.totalorder %s21, 0
    %p256 = por %p254, %p255
    %p257 = scmp.ne.s32.totalorder %s245, %s246
    %p258 = scmp.eq.s32.totalorder %s22, 3
    %p259 = por %p257, %p258
    %p261 = scmp.ne.s32.totalorder %s246, %s260
    %p262 = scmp.eq.s32.totalorder %s22, 0
    %p263 = por %p261, %p262
    %s264 = ssub.s32 %s23, %s35
    %s265 = ssub.s32 %s24, %s31
    %s266 = sor.u32 %s264, %s265
    %p267 = scmp.eq.s32.totalorder %s266, 0
    %s269 = sadd.s32 %s268, 1
    %s270 = scalar_select %p267, %s268, %s269
    %p273 = pneg %p267
    %p274 = scmp.eq.s32.totalorder %s16, 3
    %p275 = por %p273, %p274
    %p276 = scmp.ne.s32.totalorder %s268, %s271
    %p277 = scmp.eq.s32.totalorder %s16, 0
    %p278 = por %p276, %p277
    %p279 = scmp.ne.s32.totalorder %s268, %s271
    %p280 = scmp.eq.s32.totalorder %s21, 3
    %p281 = por %p279, %p280
    %p282 = scmp.ne.s32.totalorder %s271, %s272
    %p283 = scmp.eq.s32.totalorder %s21, 0
    %p284 = por %p282, %p283
    %p285 = scmp.ne.s32.totalorder %s271, %s272
    %p286 = scmp.eq.s32.totalorder %s22, 3
    %p287 = por %p285, %p286
    %p289 = scmp.ne.s32.totalorder %s272, %s288
    %p290 = scmp.eq.s32.totalorder %s22, 0
    %p291 = por %p289, %p290
    %p292 = scmp.le.s32.totalorder 1, %s16
    %p293 = scmp.lt.s32.totalorder %s16, 5
    %p294 = pnand %p292, %p293
    %p295 = pneg %p294
    // Predicated region
    $region9: #{hubert_embedding_forward.3} parent=5 // pred_check
      _
    $region10: #{hubert_embedding_forward.3} parent=5 // pred_check_branch
      %297 = sbr.rel (%p294) target = $region12
    $region11: #{hubert_embedding_forward.3} parent=5 // pred_region
      %s298 = ssub.s32 %s16, 1
      // Predicated region
      $region13: #{hubert_embedding_forward.3} parent=11 // pred_check
        %p299 = pneg %p109
      $region14: #{hubert_embedding_forward.3} parent=11 // pred_check_branch
        %301 = sbr.rel (%p299) target = $region16
      $region15: #{hubert_embedding_forward.3} parent=11 // pred_region
        _
      $region16: #{hubert_embedding_forward.3} parent=11 // pred_fallthru
        _
      // Predicated region
      $region17: #{hubert_embedding_forward.3} parent=11 // pred_check
        %p302 = pneg %p130
      $region18: #{hubert_embedding_forward.3} parent=11 // pred_check_branch
        %304 = sbr.rel (%p302) target = $region20
      $region19: #{hubert_embedding_forward.3} parent=11 // pred_region
        _
      $region20: #{hubert_embedding_forward.3} parent=11 // pred_fallthru
        _
      // Predicated region
      $region21: #{hubert_embedding_forward.3} parent=11 // pred_check
        %p305 = pneg %p151
      $region22: #{hubert_embedding_forward.3} parent=11 // pred_check_branch
        %307 = sbr.rel (%p305) target = $region24
      $region23: #{hubert_embedding_forward.3} parent=11 // pred_region
        _
      $region24: #{hubert_embedding_forward.3} parent=11 // pred_fallthru
        _
      // Predicated region
      $region25: #{hubert_embedding_forward.3} parent=11 // pred_check
        %p308 = pneg %p172
      $region26: #{hubert_embedding_forward.3} parent=11 // pred_check_branch
        %310 = sbr.rel (%p308) target = $region28
      $region27: #{hubert_embedding_forward.3} parent=11 // pred_region
        _
      $region28: #{hubert_embedding_forward.3} parent=11 // pred_fallthru
        _
      // Predicated region
      $region29: #{hubert_embedding_forward.3} parent=11 // pred_check
        %p311 = pneg %p193
      $region30: #{hubert_embedding_forward.3} parent=11 // pred_check_branch
        %313 = sbr.rel (%p311) target = $region32
      $region31: #{hubert_embedding_forward.3} parent=11 // pred_region
        _
      $region32: #{hubert_embedding_forward.3} parent=11 // pred_fallthru
        _
      // Predicated region
      $region33: #{hubert_embedding_forward.3} parent=11 // pred_check
        %p314 = pneg %p214
      $region34: #{hubert_embedding_forward.3} parent=11 // pred_check_branch
        %316 = sbr.rel (%p314) target = $region36
      $region35: #{hubert_embedding_forward.3} parent=11 // pred_region
        _
      $region36: #{hubert_embedding_forward.3} parent=11 // pred_fallthru
        _
      // Predicated region
      $region37: #{hubert_embedding_forward.3} parent=11 // pred_check
        %p317 = pneg %p235
      $region38: #{hubert_embedding_forward.3} parent=11 // pred_check_branch
        %319 = sbr.rel (%p317) target = $region40
      $region39: #{hubert_embedding_forward.3} parent=11 // pred_region
        _
      $region40: #{hubert_embedding_forward.3} parent=11 // pred_fallthru
        _
      // Predicated region
      $region41: #{hubert_embedding_forward.3} parent=11 // pred_check
        %p320 = pneg %p256
      $region42: #{hubert_embedding_forward.3} parent=11 // pred_check_branch
        %322 = sbr.rel (%p320) target = $region44
      $region43: #{hubert_embedding_forward.3} parent=11 // pred_region
        _
      $region44: #{hubert_embedding_forward.3} parent=11 // pred_fallthru
        _
    $region12: #{hubert_embedding_forward.3} parent=5 // pred_fallthru
      _
    %p323 = scmp.lt.s32.totalorder %s16, 4
    // Predicated region
    $region45: #{hubert_embedding_forward.3} parent=5 // pred_check
      %p324 = pneg %p323
    $region46: #{hubert_embedding_forward.3} parent=5 // pred_check_branch
      %326 = sbr.rel (%p324) target = $region48
    $region47: #{hubert_embedding_forward.3} parent=5 // pred_region
      // Predicated region
      $region49: #{hubert_embedding_forward.3} parent=47 // pred_check
        %p327 = pneg %p50
      $region50: #{hubert_embedding_forward.3} parent=47 // pred_check_branch
        %329 = sbr.rel (%p327) target = $region52
      $region51: #{hubert_embedding_forward.3} parent=47 // pred_region
        %s330 = smul.u32 2, %s24
        %s331 = ssub.s32 5, %s330
        %p332 = scmp.lt.s32.totalorder %s331, 2
        %s333 = scalar_select %p332, %s331, 2
        %s334 = smul.u32 4, %s333
        %s335 = smul.u32 %s334, 2
        %p336 = scmp.lt.s32.totalorder %s23, 1
        %s337 = scalar_select %p336, %s23, 1
        %p338 = scmp.lt.s32.totalorder %s330, 4
        %s339 = scalar_select %p338, %s330, 4
        %s340 = smul.addr %s339, 2
        %s341 = smul.addr %s337, 10
        %s342 = sadd.s32 %s340, %s341
        %s343 = smul.addr %s342, 4
        %s344 = scalar_lea.vmem %s0, %s343
        %s345 = smul.u32 2, %s24
        %s346 = ssub.s32 5, %s345
        %p347 = scmp.lt.s32.totalorder %s346, 2
        %s348 = scalar_select %p347, %s346, 2
        %s349 = smul.u32 4, %s348
        %s350 = smul.u32 %s349, 2
      $region52: #{hubert_embedding_forward.3} parent=47 // pred_fallthru
        _
      // Predicated region
      $region53: #{hubert_embedding_forward.3} parent=47 // pred_check
        %p351 = pneg %p82
      $region54: #{hubert_embedding_forward.3} parent=47 // pred_check_branch
        %353 = sbr.rel (%p351) target = $region56
      $region55: #{hubert_embedding_forward.3} parent=47 // pred_region
        %s354 = sadd.s32 %s24, 1
        %s355 = smul.u32 %s354, 2
        %p356 = scmp.lt.s32.totalorder %s23, 1
        %s357 = scalar_select %p356, %s23, 1
        %p358 = scmp.lt.s32.totalorder %s355, 4
        %s359 = scalar_select %p358, %s355, 4
        %s360 = smul.addr %s359, 2
        %s361 = smul.addr %s357, 10
        %s362 = sadd.s32 %s360, %s361
        %s363 = smul.addr %s362, 4
        %s364 = scalar_lea.vmem %s1, %s363
        %s365 = sadd.s32 %s24, 1
        %s366 = smul.u32 %s365, 2
      $region56: #{hubert_embedding_forward.3} parent=47 // pred_fallthru
        _
    $region48: #{hubert_embedding_forward.3} parent=5 // pred_fallthru
      _
    %p367 = scmp.le.s32.totalorder 1, %s16
    %p368 = scmp.lt.s32.totalorder %s16, 5
    %p369 = pnand %p367, %p368
    %p370 = pneg %p369
    // Predicated region
    $region57: #{hubert_embedding_forward.3} parent=5 // pred_check
      _
    $region58: #{hubert_embedding_forward.3} parent=5 // pred_check_branch
      %372 = sbr.rel (%p369) target = $region60
    $region59: #{hubert_embedding_forward.3} parent=5 // pred_region
      %s373 = ssub.s32 %s16, 1
      %s374 = smul.u32 2, %s26
      %s375 = ssub.s32 5, %s374
      %p376 = scmp.lt.s32.totalorder %s375, 2
      %s377 = scalar_select %p376, %s375, 2
      %s378 = smul.u32 4, %s377
      %s379 = smul.u32 %s378, 2
      %p380 = scmp.lt.s32.totalorder %s25, 1
      %s381 = scalar_select %p380, %s25, 1
      %p382 = scmp.lt.s32.totalorder %s374, 4
      %s383 = scalar_select %p382, %s374, 4
      %s384 = smul.addr %s383, 2
      %s385 = smul.addr %s381, 10
      %s386 = sadd.s32 %s384, %s385
      %s387 = smul.addr %s386, 4
      %s388 = scalar_lea.vmem %s0, %s387
      %p389 = pneg %p56
      %p390 = pneg %p53
      %s391 = sadd.s32 %s26, 1
      %s392 = smul.u32 %s391, 2
      %p393 = scmp.lt.s32.totalorder %s25, 1
      %s394 = scalar_select %p393, %s25, 1
      %p395 = scmp.lt.s32.totalorder %s392, 4
      %s396 = scalar_select %p395, %s392, 4
      %s397 = smul.addr %s396, 2
      %s398 = smul.addr %s394, 10
      %s399 = sadd.s32 %s397, %s398
      %s400 = smul.addr %s399, 4
      %s401 = scalar_lea.vmem %s1, %s400
      %p402 = pneg %p88
      %p403 = pneg %p85
      %p404 = pneg %p109
      %p405 = pneg %p106
      %p406 = pneg %p130
      %p407 = pneg %p127
      %p408 = pneg %p151
      %p409 = pneg %p148
      %p410 = pneg %p172
      %p411 = pneg %p169
      %p412 = pneg %p193
      %p413 = pneg %p190
      %p414 = pneg %p214
      %p415 = pneg %p211
      %p416 = pneg %p235
      %p417 = pneg %p232
      %p418 = pneg %p256
      %p419 = pneg %p253
      %p420 = pneg %p284
      %p421 = pneg %p281
      %s422 = smul.u32 2, %s26
      %p423 = scmp.lt.s32.totalorder %s25, 1
      %s424 = scalar_select %p423, %s25, 1
      %p425 = scmp.lt.s32.totalorder %s422, 3
      %s426 = scalar_select %p425, %s422, 3
      %s427 = smul.addr %s424, 4
      %s428 = sadd.s32 %s426, %s427
      %s429 = smul.addr %s428, 4
      %s430 = scalar_lea.vmem %s10, %s429
      %s431 = smul.u32 2, %s26
      %s432 = ssub.s32 5, %s431
      %p433 = scmp.lt.s32.totalorder %s432, 2
      %s434 = scalar_select %p433, %s432, 2
      %s435 = smul.u32 4, %s434
      %s436 = smul.u32 %s435, 2
      %p437 = scmp.lt.s32.totalorder %s25, 1
      %s438 = scalar_select %p437, %s25, 1
      %p439 = scmp.lt.s32.totalorder %s431, 4
      %s440 = scalar_select %p439, %s431, 4
      %s441 = smul.addr %s440, 2
      %s442 = smul.addr %s438, 10
      %s443 = sadd.s32 %s441, %s442
      %s444 = smul.addr %s443, 4
      %s445 = scalar_lea.vmem %s0, %s444
      %s446 = smul.u32 2, %s26
      %s447 = ssub.s32 5, %s446
      %p448 = scmp.lt.s32.totalorder %s447, 2
      %s449 = scalar_select %p448, %s447, 2
      %s450 = smul.u32 4, %s449
      %s451 = smul.u32 %s450, 2
      %s452 = sadd.s32 %s26, 1
      %s453 = smul.u32 %s452, 2
      %p454 = scmp.lt.s32.totalorder %s25, 1
      %s455 = scalar_select %p454, %s25, 1
      %p456 = scmp.lt.s32.totalorder %s453, 4
      %s457 = scalar_select %p456, %s453, 4
      %s458 = smul.addr %s457, 2
      %s459 = smul.addr %s455, 10
      %s460 = sadd.s32 %s458, %s459
      %s461 = smul.addr %s460, 4
      %s462 = scalar_lea.vmem %s1, %s461
      %s463 = sadd.s32 %s26, 1
      %s464 = smul.u32 %s463, 2
      %s465 = smul.u32 2, %s26
      %p466 = scmp.lt.s32.totalorder %s25, 1
      %s467 = scalar_select %p466, %s25, 1
      %p468 = scmp.lt.s32.totalorder %s465, 3
      %s469 = scalar_select %p468, %s465, 3
      %s470 = smul.addr %s467, 4
      %s471 = sadd.s32 %s469, %s470
      %s472 = smul.addr %s471, 4
      %s473 = scalar_lea.vmem %s10, %s472
      %s474 = smul.u32 2, %s26
      %v475 = vld [vmem:[%s445] sm:$0xff]
      %v476 = vld [vmem:[%s445 + $0x8] sm:$0xff]
      %477 = vst [vmem:[#allocation2] sm:$0xff] %v475
      %478 = vst [vmem:[#allocation2 + $0x8] sm:$0xff] %v476
      %v479 = vld [vmem:[%s462] sm:$0xff]
      %480 = vst [vmem:[#allocation2 + $0x10] sm:$0xff] %v479
      %v481 = vld [vmem:[#allocation2] sm:$0xff]
      %v482 = vld [vmem:[#allocation2 + $0x8] sm:$0xff]
      %v483 = vld [vmem:[#allocation2 + $0x10] sm:$0xff]
      %v484 = vld [vmem:[%s2] sm:$0xf]
      %v485 = vld [vmem:[%s2 + $0x4] sm:$0xf]
      %v486 = vld [vmem:[%s2 + $0x8] sm:$0xf]
      %v487 = vld [vmem:[%s2 + $0xc] sm:$0xf]
      %v488 = vld [vmem:[%s2 + $0x10] sm:$0xf]
      %v489 = vld [vmem:[%s2 + $0x14] sm:$0xf]
      %v490 = vld [vmem:[%s2 + $0x18] sm:$0xf]
      %v491 = vld [vmem:[%s2 + $0x1c] sm:$0xf]
      %v492 = vld [vmem:[%s2 + $0x20] sm:$0xf]
      %v493 = vld [vmem:[%s2 + $0x24] sm:$0xf]
      %v494 = vld [vmem:[%s2 + $0x28] sm:$0xf]
      %v495 = vld [vmem:[%s2 + $0x2c] sm:$0xf]
      %v496 = vld [vmem:[%s2 + $0x30] sm:$0xf]
      %v497 = vld [vmem:[%s2 + $0x34] sm:$0xf]
      %v498 = vld [vmem:[%s2 + $0x38] sm:$0xf]
      %v499 = vld [vmem:[%s2 + $0x3c] sm:$0xf]
      %v500 = vld [vmem:[%s2 + $0x40] sm:$0xf]
      %v501 = vld [vmem:[%s2 + $0x44] sm:$0xf]
      %v502 = vld [vmem:[%s2 + $0x48] sm:$0xf]
      %v503 = vld [vmem:[%s2 + $0x4c] sm:$0xf]
      %v504 = vld [vmem:[%s2 + $0x50] sm:$0xf]
      %v505 = vld [vmem:[%s2 + $0x54] sm:$0xf]
      %v506 = vld [vmem:[%s2 + $0x58] sm:$0xf]
      %v507 = vld [vmem:[%s2 + $0x5c] sm:$0xf]
      %v508 = vld [vmem:[%s2 + $0x60] sm:$0xf]
      %v509 = vld [vmem:[%s2 + $0x64] sm:$0xf]
      %v510 = vld [vmem:[%s2 + $0x68] sm:$0xf]
      %v511 = vld [vmem:[%s2 + $0x6c] sm:$0xf]
      %v512 = vld [vmem:[%s2 + $0x70] sm:$0xf]
      %v513 = vld [vmem:[%s2 + $0x74] sm:$0xf]
      %v514 = vld [vmem:[%s2 + $0x78] sm:$0xf]
      %v515 = vld [vmem:[%s2 + $0x7c] sm:$0xf]
      %v519 = vunpack.c.l.b16 %v481
      %v520 = vunpack.c.h.b16 %v481
      %v521 = vunpack.c.l.b16 %v482
      %v522 = vunpack.c.h.b16 %v482
      %v523 = vunpack.c.l.b16 %v483
      %v524 = vunpack.c.h.b16 %v483
      %v525 = vpack.c.b16 %v521, %v519
      %v526 = vpack.c.b16 %v522, %v520
      %v527 = vpack.c.b16 %v523, %v523
      %v528 = vpack.c.b16 %v524, %v524
      %v565 = vunpack.c.l.b16 %v484
      %v566 = vunpack.c.l.b16 %v485
      %v567 = vunpack.c.l.b16 %v486
      %v568 = vunpack.c.l.b16 %v487
      %v569 = vunpack.c.l.b16 %v488
      %v570 = vunpack.c.l.b16 %v489
      %v571 = vunpack.c.l.b16 %v490
      %v572 = vunpack.c.l.b16 %v491
      %v573 = vunpack.c.l.b16 %v492
      %v574 = vunpack.c.l.b16 %v493
      %v575 = vunpack.c.l.b16 %v494
      %v576 = vunpack.c.l.b16 %v495
      %v577 = vunpack.c.l.b16 %v496
      %v578 = vunpack.c.l.b16 %v497
      %v579 = vunpack.c.l.b16 %v498
      %v580 = vunpack.c.l.b16 %v499
      %v581 = vunpack.c.l.b16 %v500
      %v582 = vunpack.c.l.b16 %v501
      %v583 = vunpack.c.l.b16 %v502
      %v584 = vunpack.c.l.b16 %v503
      %v585 = vunpack.c.l.b16 %v504
      %v586 = vunpack.c.l.b16 %v505
      %v587 = vunpack.c.l.b16 %v506
      %v588 = vunpack.c.l.b16 %v507
      %v589 = vunpack.c.l.b16 %v508
      %v590 = vunpack.c.l.b16 %v509
      %v591 = vunpack.c.l.b16 %v510
      %v592 = vunpack.c.l.b16 %v511
      %v593 = vunpack.c.l.b16 %v512
      %v594 = vunpack.c.l.b16 %v513
      %v595 = vunpack.c.l.b16 %v514
      %v596 = vunpack.c.l.b16 %v515
      %v597 = vpack.c.b16 %v566, %v565
      %v598 = vpack.c.b16 %v568, %v567
      %v599 = vpack.c.b16 %v570, %v569
      %v600 = vpack.c.b16 %v572, %v571
      %v601 = vpack.c.b16 %v574, %v573
      %v602 = vpack.c.b16 %v576, %v575
      %v603 = vpack.c.b16 %v578, %v577
      %v604 = vpack.c.b16 %v580, %v579
      %v605 = vpack.c.b16 %v582, %v581
      %v606 = vpack.c.b16 %v584, %v583
      %v607 = vpack.c.b16 %v586, %v585
      %v608 = vpack.c.b16 %v588, %v587
      %v609 = vpack.c.b16 %v590, %v589
      %v610 = vpack.c.b16 %v592, %v591
      %v611 = vpack.c.b16 %v594, %v593
      %v612 = vpack.c.b16 %v596, %v595
      %629 = vmatpush.bf16.msra.mxu0 %v604
      %630 = vmatpush.bf16.msra.mxu0 %v603
      %631 = vmatpush.bf16.msra.mxu0 %v602
      %632 = vmatpush.bf16.msra.mxu0 %v601
      %633 = vmatpush.bf16.msra.mxu0 %v600
      %634 = vmatpush.bf16.msra.mxu0 %v599
      %635 = vmatpush.bf16.msra.mxu0 %v598
      %636 = vmatpush.bf16.msra.mxu0 %v597
      %637 = vmatmul.bf16.gmra.mxu0 %v525
      %v638 = vpop.f32.mrf.mxu0
      %v639 = vadd.f32 0.0, %v638
      %v640 = vpop.f32.mrf.mxu0
      %v641 = vadd.f32 0.0, %v640
      %642 = vmatmul.bf16.gmra.mxu0 %v527
      %v643 = vpop.f32.mrf.mxu0
      %v644 = vpop.f32.mrf.mxu0
      %645 = vdwg.mxu0
      %646 = vmatpush.bf16.msra.mxu0 %v612
      %647 = vmatpush.bf16.msra.mxu0 %v611
      %648 = vmatpush.bf16.msra.mxu0 %v610
      %649 = vmatpush.bf16.msra.mxu0 %v609
      %650 = vmatpush.bf16.msra.mxu0 %v608
      %651 = vmatpush.bf16.msra.mxu0 %v607
      %652 = vmatpush.bf16.msra.mxu0 %v606
      %653 = vmatpush.bf16.msra.mxu0 %v605
      %654 = vmatmul.bf16.gmra.mxu0 %v526
      %v655 = vpop.f32.mrf.mxu0
      %v656 = vadd.f32 %v639, %v655
      %v657 = vpop.f32.mrf.mxu0
      %v658 = vadd.f32 %v641, %v657
      %659 = vmatmul.bf16.gmra.mxu0 %v528
      %v660 = vpop.f32.mrf.mxu0
      %v661 = vpop.f32.mrf.mxu0
      %662 = vdwg.mxu0
      %v663 = vadd.f32 %v656, 0.0
      %v664 = vadd.f32 %v658, 0.0
      %s665 = scalar_lea.vmem %s2, 128
      %v666 = vld [vmem:[%s665] sm:$0xf]
      %v667 = vld [vmem:[%s665 + $0x4] sm:$0xf]
      %v668 = vld [vmem:[%s665 + $0x8] sm:$0xf]
      %v669 = vld [vmem:[%s665 + $0xc] sm:$0xf]
      %v670 = vld [vmem:[%s665 + $0x10] sm:$0xf]
      %v671 = vld [vmem:[%s665 + $0x14] sm:$0xf]
      %v672 = vld [vmem:[%s665 + $0x18] sm:$0xf]
      %v673 = vld [vmem:[%s665 + $0x1c] sm:$0xf]
      %v674 = vld [vmem:[%s665 + $0x20] sm:$0xf]
      %v675 = vld [vmem:[%s665 + $0x24] sm:$0xf]
      %v676 = vld [vmem:[%s665 + $0x28] sm:$0xf]
      %v677 = vld [vmem:[%s665 + $0x2c] sm:$0xf]
      %v678 = vld [vmem:[%s665 + $0x30] sm:$0xf]
      %v679 = vld [vmem:[%s665 + $0x34] sm:$0xf]
      %v680 = vld [vmem:[%s665 + $0x38] sm:$0xf]
      %v681 = vld [vmem:[%s665 + $0x3c] sm:$0xf]
      %v682 = vld [vmem:[%s665 + $0x40] sm:$0xf]
      %v683 = vld [vmem:[%s665 + $0x44] sm:$0xf]
      %v684 = vld [vmem:[%s665 + $0x48] sm:$0xf]
      %v685 = vld [vmem:[%s665 + $0x4c] sm:$0xf]
      %v686 = vld [vmem:[%s665 + $0x50] sm:$0xf]
      %v687 = vld [vmem:[%s665 + $0x54] sm:$0xf]
      %v688 = vld [vmem:[%s665 + $0x58] sm:$0xf]
      %v689 = vld [vmem:[%s665 + $0x5c] sm:$0xf]
      %v690 = vld [vmem:[%s665 + $0x60] sm:$0xf]
      %v691 = vld [vmem:[%s665 + $0x64] sm:$0xf]
      %v692 = vld [vmem:[%s665 + $0x68] sm:$0xf]
      %v693 = vld [vmem:[%s665 + $0x6c] sm:$0xf]
      %v694 = vld [vmem:[%s665 + $0x70] sm:$0xf]
      %v695 = vld [vmem:[%s665 + $0x74] sm:$0xf]
      %v696 = vld [vmem:[%s665 + $0x78] sm:$0xf]
      %v697 = vld [vmem:[%s665 + $0x7c] sm:$0xf]
      %v730 = vunpack.c.l.b16 %v666
      %v731 = vunpack.c.l.b16 %v667
      %v732 = vunpack.c.l.b16 %v668
      %v733 = vunpack.c.l.b16 %v669
      %v734 = vunpack.c.l.b16 %v670
      %v735 = vunpack.c.l.b16 %v671
      %v736 = vunpack.c.l.b16 %v672
      %v737 = vunpack.c.l.b16 %v673
      %v738 = vunpack.c.l.b16 %v674
      %v739 = vunpack.c.l.b16 %v675
      %v740 = vunpack.c.l.b16 %v676
      %v741 = vunpack.c.l.b16 %v677
      %v742 = vunpack.c.l.b16 %v678
      %v743 = vunpack.c.l.b16 %v679
      %v744 = vunpack.c.l.b16 %v680
      %v745 = vunpack.c.l.b16 %v681
      %v746 = vunpack.c.l.b16 %v682
      %v747 = vunpack.c.l.b16 %v683
      %v748 = vunpack.c.l.b16 %v684
      %v749 = vunpack.c.l.b16 %v685
      %v750 = vunpack.c.l.b16 %v686
      %v751 = vunpack.c.l.b16 %v687
      %v752 = vunpack.c.l.b16 %v688
      %v753 = vunpack.c.l.b16 %v689
      %v754 = vunpack.c.l.b16 %v690
      %v755 = vunpack.c.l.b16 %v691
      %v756 = vunpack.c.l.b16 %v692
      %v757 = vunpack.c.l.b16 %v693
      %v758 = vunpack.c.l.b16 %v694
      %v759 = vunpack.c.l.b16 %v695
      %v760 = vunpack.c.l.b16 %v696
      %v761 = vunpack.c.l.b16 %v697
      %v762 = vpack.c.b16 %v731, %v730
      %v763 = vpack.c.b16 %v733, %v732
      %v764 = vpack.c.b16 %v735, %v734
      %v765 = vpack.c.b16 %v737, %v736
      %v766 = vpack.c.b16 %v739, %v738
      %v767 = vpack.c.b16 %v741, %v740
      %v768 = vpack.c.b16 %v743, %v742
      %v769 = vpack.c.b16 %v745, %v744
      %v770 = vpack.c.b16 %v747, %v746
      %v771 = vpack.c.b16 %v749, %v748
      %v772 = vpack.c.b16 %v751, %v750
      %v773 = vpack.c.b16 %v753, %v752
      %v774 = vpack.c.b16 %v755, %v754
      %v775 = vpack.c.b16 %v757, %v756
      %v776 = vpack.c.b16 %v759, %v758
      %v777 = vpack.c.b16 %v761, %v760
      %794 = vmatpush.bf16.msra.mxu0 %v769
      %795 = vmatpush.bf16.msra.mxu0 %v768
      %796 = vmatpush.bf16.msra.mxu0 %v767
      %797 = vmatpush.bf16.msra.mxu0 %v766
      %798 = vmatpush.bf16.msra.mxu0 %v765
      %799 = vmatpush.bf16.msra.mxu0 %v764
      %800 = vmatpush.bf16.msra.mxu0 %v763
      %801 = vmatpush.bf16.msra.mxu0 %v762
      %802 = vmatmul.bf16.gmra.mxu0 %v525
      %v803 = vpop.f32.mrf.mxu0
      %v804 = vadd.f32 0.0, %v803
      %v805 = vpop.f32.mrf.mxu0
      %v806 = vadd.f32 0.0, %v805
      %807 = vmatmul.bf16.gmra.mxu0 %v527
      %v808 = vpop.f32.mrf.mxu0
      %v809 = vadd.f32 0.0, %v808
      %v810 = vpop.f32.mrf.mxu0
      %811 = vdwg.mxu0
      %812 = vmatpush.bf16.msra.mxu0 %v777
      %813 = vmatpush.bf16.msra.mxu0 %v776
      %814 = vmatpush.bf16.msra.mxu0 %v775
      %815 = vmatpush.bf16.msra.mxu0 %v774
      %816 = vmatpush.bf16.msra.mxu0 %v773
      %817 = vmatpush.bf16.msra.mxu0 %v772
      %818 = vmatpush.bf16.msra.mxu0 %v771
      %819 = vmatpush.bf16.msra.mxu0 %v770
      %820 = vmatmul.bf16.gmra.mxu0 %v526
      %v821 = vpop.f32.mrf.mxu0
      %v822 = vadd.f32 %v804, %v821
      %v823 = vpop.f32.mrf.mxu0
      %v824 = vadd.f32 %v806, %v823
      %825 = vmatmul.bf16.gmra.mxu0 %v528
      %v826 = vpop.f32.mrf.mxu0
      %v827 = vadd.f32 %v809, %v826
      %v828 = vpop.f32.mrf.mxu0
      %829 = vdwg.mxu0
      %vm833 = vcmask 1046528
      %v834 = vrot.slane %v822, 1
      %v835 = vrot.slane %v824, 1
      %v836 = vsel %vm833, %v834, %v835
      %v837 = vrot.slane %v827, 1
      %v838 = vsel %vm833, %v835, %v837
      %v841 = vadd.f32 %v663, %v836
      %v842 = vadd.f32 %v664, %v838
      %v843 = vld [vmem:[%s3] sm:$0x1]
      %v845 = vperm.slane %v843, 0
      %v847 = vadd.f32 %v841, %v845
      %v848 = vadd.f32 %v842, %v845
      %v849 = vld [vmem:[%s4] sm:$0x1]
      %v850 = vld [vmem:[%s5] sm:$0x1]
      %851 = vadd.xlane.f32.xlu0 %v847
      %v852 = vpop.xlane.xlu0 %851
      %853 = vadd.xlane.f32.xlu0 %v848
      %v854 = vpop.xlane.xlu0 %853
      %v855 = vmul.f32 %v852, 0.03125
      %v856 = vmul.f32 %v854, 0.03125
      %v857 = vsub.f32 %v847, %v855
      %v858 = vsub.f32 %v848, %v856
      %v859 = vlaneseq
      %v860 = vand.u32 %v859, 127
      %vm861 = vcmp.lt.s32.totalorder %v860, 32
      %v862 = vsel %vm861, %v857, 0.0
      %v863 = vsel %vm861, %v858, 0.0
      %v864 = vmul.f32 %v862, %v862
      %v865 = vmul.f32 %v863, %v863
      %866 = vadd.xlane.f32.xlu0 %v864
      %v867 = vpop.xlane.xlu0 %866
      %868 = vadd.xlane.f32.xlu0 %v865
      %v869 = vpop.xlane.xlu0 %868
      %v870 = vmul.f32 %v867, 0.03125
      %v871 = vmul.f32 %v869, 0.03125
      %v872 = vadd.f32 %v870, 1e-05
      %v873 = vadd.f32 %v871, 1e-05
      %v874 = vrsqrt.pop %v872
      %v875 = vmul.f32 %v874, %v872
      %v876 = vmul.f32 %v875, %v874
      %v877 = vmul.f32 0.5, %v876
      %v878 = vsub.f32 1.5, %v877
      %v879 = vmul.f32 %v874, %v878
      %vm880 = vweird.f32 %v872
      %vm881 = vweird.f32 %v874
      %vm882 = vmor %vm880, %vm881
      %v883 = vsel %vm882, %v874, %v879
      %v884 = vrsqrt.pop %v873
      %v885 = vmul.f32 %v884, %v873
      %v886 = vmul.f32 %v885, %v884
      %v887 = vmul.f32 0.5, %v886
      %v888 = vsub.f32 1.5, %v887
      %v889 = vmul.f32 %v884, %v888
      %vm890 = vweird.f32 %v873
      %vm891 = vweird.f32 %v884
      %vm892 = vmor %vm890, %vm891
      %v893 = vsel %vm892, %v884, %v889
      %v894 = vmul.f32 %v862, %v883
      %v895 = vmul.f32 %v863, %v893
      %v897 = vperm.slane %v849, 0
      %v899 = vmul.f32 %v894, %v897
      %v900 = vmul.f32 %v895, %v897
      %v902 = vperm.slane %v850, 0
      %v904 = vadd.f32 %v899, %v902
      %v905 = vadd.f32 %v900, %v902
      %v906 = vmul.f32 %v904, 0.5
      %v907 = vmul.f32 %v905, 0.5
      %v908 = vmul.f32 %v904, %v904
      %v909 = vmul.f32 %v905, %v905
      %v910 = vmul.f32 %v908, %v904
      %v911 = vmul.f32 %v909, %v905
      %v912 = vmul.f32 %v910, 0.044715
      %v913 = vmul.f32 %v911, 0.044715
      %v914 = vadd.f32 %v904, %v912
      %v915 = vadd.f32 %v905, %v913
      %v916 = vmul.f32 %v914, 0.7978846
      %v917 = vmul.f32 %v915, 0.7978846
      %v918 = vtanh.pop %v916
      %v919 = vtanh.pop %v917
      %v920 = vadd.f32 %v918, 1.0
      %v921 = vadd.f32 %v919, 1.0
      %v922 = vmul.f32 %v906, %v920
      %v923 = vmul.f32 %v907, %v921
      %v924 = vld [vmem:[%s6] sm:$0x1]
      %v925 = vld [vmem:[%s7] sm:$0x1]
      %926 = vadd.xlane.f32.xlu0 %v922
      %v927 = vpop.xlane.xlu0 %926
      %928 = vadd.xlane.f32.xlu0 %v923
      %v929 = vpop.xlane.xlu0 %928
      %v930 = vmul.f32 %v927, 0.03125
      %v931 = vmul.f32 %v929, 0.03125
      %v932 = vsub.f32 %v922, %v930
      %v933 = vsub.f32 %v923, %v931
      %v934 = vsel %vm861, %v932, 0.0
      %v935 = vsel %vm861, %v933, 0.0
      %v936 = vmul.f32 %v934, %v934
      %v937 = vmul.f32 %v935, %v935
      %938 = vadd.xlane.f32.xlu0 %v936
      %v939 = vpop.xlane.xlu0 %938
      %940 = vadd.xlane.f32.xlu0 %v937
      %v941 = vpop.xlane.xlu0 %940
      %v942 = vmul.f32 %v939, 0.03125
      %v943 = vmul.f32 %v941, 0.03125
      %v944 = vadd.f32 %v942, 1e-05
      %v945 = vadd.f32 %v943, 1e-05
      %v946 = vrsqrt.pop %v944
      %v947 = vmul.f32 %v946, %v944
      %v948 = vmul.f32 %v947, %v946
      %v949 = vmul.f32 0.5, %v948
      %v950 = vsub.f32 1.5, %v949
      %v951 = vmul.f32 %v946, %v950
      %vm952 = vweird.f32 %v944
      %vm953 = vweird.f32 %v946
      %vm954 = vmor %vm952, %vm953
      %v955 = vsel %vm954, %v946, %v951
      %v956 = vrsqrt.pop %v945
      %v957 = vmul.f32 %v956, %v945
      %v958 = vmul.f32 %v957, %v956
      %v959 = vmul.f32 0.5, %v958
      %v960 = vsub.f32 1.5, %v959
      %v961 = vmul.f32 %v956, %v960
      %vm962 = vweird.f32 %v945
      %vm963 = vweird.f32 %v956
      %vm964 = vmor %vm962, %vm963
      %v965 = vsel %vm964, %v956, %v961
      %v966 = vmul.f32 %v934, %v955
      %v967 = vmul.f32 %v935, %v965
      %v969 = vperm.slane %v924, 0
      %v971 = vmul.f32 %v966, %v969
      %v972 = vmul.f32 %v967, %v969
      %v974 = vperm.slane %v925, 0
      %v976 = vadd.f32 %v971, %v974
      %v977 = vadd.f32 %v972, %v974
      %v978 = vpack.c.bf16 %v977, %v976
      %v979 = vld [vmem:[%s8] sm:$0xf]
      %v980 = vld [vmem:[%s8 + $0x4] sm:$0xf]
      %v981 = vld [vmem:[%s8 + $0x8] sm:$0xf]
      %v982 = vld [vmem:[%s8 + $0xc] sm:$0xf]
      %v983 = vld [vmem:[%s8 + $0x10] sm:$0xf]
      %v984 = vld [vmem:[%s8 + $0x14] sm:$0xf]
      %v985 = vld [vmem:[%s8 + $0x18] sm:$0xf]
      %v986 = vld [vmem:[%s8 + $0x1c] sm:$0xf]
      %v987 = vld [vmem:[%s8 + $0x20] sm:$0xf]
      %v988 = vld [vmem:[%s8 + $0x24] sm:$0xf]
      %v989 = vld [vmem:[%s8 + $0x28] sm:$0xf]
      %v990 = vld [vmem:[%s8 + $0x2c] sm:$0xf]
      %v991 = vld [vmem:[%s8 + $0x30] sm:$0xf]
      %v992 = vld [vmem:[%s8 + $0x34] sm:$0xf]
      %v993 = vld [vmem:[%s8 + $0x38] sm:$0xf]
      %v994 = vld [vmem:[%s8 + $0x3c] sm:$0xf]
      %v995 = vld [vmem:[%s9] sm:$0x1]
      %v997 = vperm.slane %v995, 0
      %v1015 = vunpack.c.l.b16 %v979
      %v1016 = vunpack.c.l.b16 %v980
      %v1017 = vunpack.c.l.b16 %v981
      %v1018 = vunpack.c.l.b16 %v982
      %v1019 = vunpack.c.l.b16 %v983
      %v1020 = vunpack.c.l.b16 %v984
      %v1021 = vunpack.c.l.b16 %v985
      %v1022 = vunpack.c.l.b16 %v986
      %v1023 = vunpack.c.l.b16 %v987
      %v1024 = vunpack.c.l.b16 %v988
      %v1025 = vunpack.c.l.b16 %v989
      %v1026 = vunpack.c.l.b16 %v990
      %v1027 = vunpack.c.l.b16 %v991
      %v1028 = vunpack.c.l.b16 %v992
      %v1029 = vunpack.c.l.b16 %v993
      %v1030 = vunpack.c.l.b16 %v994
      %v1031 = vpack.c.b16 %v1016, %v1015
      %v1032 = vpack.c.b16 %v1018, %v1017
      %v1033 = vpack.c.b16 %v1020, %v1019
      %v1034 = vpack.c.b16 %v1022, %v1021
      %v1035 = vpack.c.b16 %v1024, %v1023
      %v1036 = vpack.c.b16 %v1026, %v1025
      %v1037 = vpack.c.b16 %v1028, %v1027
      %v1038 = vpack.c.b16 %v1030, %v1029
      %1047 = vmatpush.bf16.msra.mxu0 %v1038
      %1048 = vmatpush.bf16.msra.mxu0 %v1037
      %1049 = vmatpush.bf16.msra.mxu0 %v1036
      %1050 = vmatpush.bf16.msra.mxu0 %v1035
      %1051 = vmatpush.bf16.msra.mxu0 %v1034
      %1052 = vmatpush.bf16.msra.mxu0 %v1033
      %1053 = vmatpush.bf16.msra.mxu0 %v1032
      %1054 = vmatpush.bf16.msra.mxu0 %v1031
      %1055 = vmatmul.bf16.gmra.mxu0 %v978
      %v1056 = vpop.f32.mrf.mxu0
      %v1057 = vadd.f32 %v997, %v1056
      %v1058 = vpop.f32.mrf.mxu0
      %v1059 = vadd.f32 %v997, %v1058
      %1060 = vdwg.mxu0
      %v1061 = vpack.c.bf16 %v1057, %v1057
      %v1062 = vpack.c.bf16 %v1059, %v1059
      %1063 = vst [vmem:[%s473] sm:$0xf] %v1061
      %1064 = vst [vmem:[%s473 + $0x4] sm:$0xf] %v1062
      %s1065 = smul.u32 2, %s26
      %p1066 = scmp.lt.s32.totalorder %s25, 1
      %s1067 = scalar_select %p1066, %s25, 1
      %p1068 = scmp.lt.s32.totalorder %s1065, 3
      %s1069 = scalar_select %p1068, %s1065, 3
      %s1070 = smul.addr %s1067, 4
      %s1071 = sadd.s32 %s1069, %s1070
      %s1072 = smul.addr %s1071, 4
      %s1073 = scalar_lea.vmem %s10, %s1072
      // Predicated region
      $region61: #{hubert_embedding_forward.3} parent=59 // pred_check
        %p1074 = pneg %p281
      $region62: #{hubert_embedding_forward.3} parent=59 // pred_check_branch
        %1076 = sbr.rel (%p1074) target = $region64
      $region63: #{hubert_embedding_forward.3} parent=59 // pred_region
        %s1077 = smul.u32 2, %s26
      $region64: #{hubert_embedding_forward.3} parent=59 // pred_fallthru
        _
    $region60: #{hubert_embedding_forward.3} parent=5 // pred_fallthru
      _
    %p1078 = scmp.le.s32.totalorder 2, %s16
    // Predicated region
    $region65: #{hubert_embedding_forward.3} parent=5 // pred_check
      %p1079 = pneg %p1078
    $region66: #{hubert_embedding_forward.3} parent=5 // pred_check_branch
      %1081 = sbr.rel (%p1079) target = $region68
    $region67: #{hubert_embedding_forward.3} parent=5 // pred_region
      %s1082 = ssub.s32 %s16, 2
      // Predicated region
      $region69: #{hubert_embedding_forward.3} parent=67 // pred_check
        %p1083 = pneg %p287
      $region70: #{hubert_embedding_forward.3} parent=67 // pred_check_branch
        %1085 = sbr.rel (%p1083) target = $region72
      $region71: #{hubert_embedding_forward.3} parent=67 // pred_region
        %s1086 = smul.u32 2, %s28
        %p1087 = scmp.lt.s32.totalorder %s27, 1
        %s1088 = scalar_select %p1087, %s27, 1
        %p1089 = scmp.lt.s32.totalorder %s1086, 3
        %s1090 = scalar_select %p1089, %s1086, 3
        %s1091 = smul.addr %s1088, 4
        %s1092 = sadd.s32 %s1090, %s1091
        %s1093 = smul.addr %s1092, 4
        %s1094 = scalar_lea.vmem %s10, %s1093
      $region72: #{hubert_embedding_forward.3} parent=67 // pred_fallthru
        _
    $region68: #{hubert_embedding_forward.3} parent=5 // pred_fallthru
      _
  $region6: #{hubert_embedding_forward.3} parent=0 // loop_footer
    %s20 = sadd.s32 1, %s16
  $region7: #{hubert_embedding_forward.3} parent=0 // loop_footer_branch
    %15 = sbr.rel target = $region3
  $region8: #{hubert_embedding_forward.3} parent=0 // loop_exit
    _

</llo_original>
